<compile_context>
chip_gen: v5e
topology: v5e:2x2
jax: 0.10.0
libtpu: 0.0.40
codegen_flags: <defaults>
</compile_context>

<pallas_src>
import jax
import jax.numpy as jnp
from jax import lax
from jax.experimental import pallas as pl
from jax.experimental.pallas import tpu as pltpu


# tanh(.) * sigmoid(.) is strictly > -1, so -1 is a valid finite lower bound for
# the running softmax max: masked / empty tiles stay finite (no -inf NaN cases).
_GATE_FLOOR = -1.0


def _round_up(v, m):
    return ((v + m - 1) // m) * m


def _cdiv(a, b):
    return -(-a // b)


def _tpu_vmem_bytes():
    try:
        return int(pltpu.get_tpu_info().vmem_capacity_bytes)
    except Exception:
        return 64 << 20  # conservative default: v7x per-TensorCore VMEM


def _tensorcores_per_chip():
    try:
        kind = jax.devices()[0].device_kind.lower()
    except Exception:
        return 1
    # Chips that expose 2 TensorCores behind one JAX device (megacore / v7x).
    if any(tag in kind for tag in ("v4", "v5p", "v7", "7x")):
        return 2
    return 1


def _make_kernel(*, n_classes, c_pad, block_n, blocks_per_split, n_true, n_pad,
                 mm_dtype, vpu_gate):
    K = n_classes
    needs_mask = (n_pad != n_true)

    def kernel(x_ref, wa_ref, wb_ref, ba_ref, bb_ref,
               acc_out_ref, m_out_ref, l_out_ref,
               m_sc, l_sc, acc_sc):
        i = pl.program_id(1)  # reduction step within this split

        @pl.when(i == 0)
        def _init():
            m_sc[...] = jnp.full((1, K), _GATE_FLOOR, jnp.float32)
            l_sc[...] = jnp.zeros((1, K), jnp.float32)
            acc_sc[...] = jnp.zeros((K, c_pad), jnp.float32)

        x = x_ref[...]                                   # (block_n, c_pad)
        xf = x.astype(jnp.float32)

        # Folded gate: z = x @ W_eff + b_eff per branch.  Exact f32 VPU path for
        # K == 1 (broadcast-multiply + lane reduce); MXU for general K.
        if vpu_gate:
            za = jnp.sum(xf * wa_ref[...], axis=-1, keepdims=True) + ba_ref[...]
            zb = jnp.sum(xf * wb_ref[...], axis=-1, keepdims=True) + bb_ref[...]
        else:
            za = jnp.dot(xf, wa_ref[...],
                         preferred_element_type=jnp.float32) + ba_ref[...]
            zb = jnp.dot(xf, wb_ref[...],
                         preferred_element_type=jnp.float32) + bb_ref[...]

        g = jnp.tanh(za) * jax.nn.sigmoid(zb)            # (block_n, K), in (-1, 1)

        if needs_mask:
            s = pl.program_id(0)
            row0 = (s * blocks_per_split + i) * block_n
            rows = row0 + lax.broadcasted_iota(jnp.int32, (block_n, 1), 0)
            valid = rows < n_true
            g = jnp.where(valid, g, _GATE_FLOOR)

        # Online softmax over N (finite floor instead of -inf: gates are bounded).
        m_prev = m_sc[...]
        m_new = jnp.maximum(m_prev, jnp.max(g, axis=0, keepdims=True))
        alpha = jnp.exp(m_prev - m_new)                  # (1, K)
        e = jnp.exp(g - m_new)                           # (block_n, K)
        if needs_mask:
            e = jnp.where(valid, e, 0.0)

        # The SAME rounded e feeds numerator and denominator (consistent when bf16).
        e_mm = e.astype(mm_dtype)
        l_sc[...] = alpha * l_sc[...] + jnp.sum(
            e_mm.astype(jnp.float32), axis=0, keepdims=True)

        # Partial weighted sum of the SAME x tile: contract over N with a
        # transposed-LHS matmul -> (K, c_pad).  No extra x read, no transpose.
        part = lax.dot_general(e_mm, x.astype(mm_dtype),
                               (((0,), (0,)), ((), ())),
                               preferred_element_type=jnp.float32)
        acc_sc[...] = alpha.T * acc_sc[...] + part
        m_sc[...] = m_new

        @pl.when(i == pl.num_programs(1) - 1)
        def _finalize():
            acc_out_ref[0] = acc_sc[...]                 # (K, c_pad) partial
            m_out_ref[0] = m_sc[...]                     # (1, K) running max
            l_out_ref[0] = l_sc[...]                     # (1, K) running sum

    return kernel


def aggregation_forward(x, params, *, block_n=None, num_splits=None,
                        matmul_dtype=None, vmem_limit_bytes=None):
    """x: (N, C).  params: see init_params.  Returns (K, C) float32."""
    N, C = x.shape
    K = params["w2a"].shape[0]            # n_classes (w2* kept in PyTorch (out, in) layout)

    if matmul_dtype is None:
        matmul_dtype = jnp.bfloat16 if x.dtype == jnp.bfloat16 else jnp.float32

    # ---- Fold Linear2(Linear1(.)) into one C -> K linear per branch (exact algebra,
    #      done once on the params; no nonlinearity sits between the two Linears). ----
    f32 = jnp.float32
    w2a_t = params["w2a"].astype(f32).T                      # (H, K)
    w2b_t = params["w2b"].astype(f32).T
    wa = params["w1a"].astype(f32) @ w2a_t                   # (C, K)
    ba = params["b1a"].astype(f32) @ w2a_t + params["b2a"].astype(f32)   # (1, K)
    wb = params["w1b"].astype(f32) @ w2b_t
    bb = params["b1b"].astype(f32) @ w2b_t + params["b2b"].astype(f32)

    # ---- Lane-dense feature dim (output (K, C_pad) stays unmasked-vst friendly). ----
    C_pad = _round_up(C, 128)
    if C_pad != C:
        x = jnp.pad(x, ((0, 0), (0, C_pad - C)))
        wa = jnp.pad(wa, ((0, C_pad - C), (0, 0)))
        wb = jnp.pad(wb, ((0, C_pad - C), (0, 0)))

    vpu_gate = (K == 1)
    if vpu_gate:                      # (K, C_pad) broadcast rows for the VPU reduce path
        wa, wb = wa.T, wb.T

    # ---- Generation-aware VMEM plan. ----
    x_item = jnp.dtype(x.dtype).itemsize
    vmem_cap = _tpu_vmem_bytes()
    if vmem_limit_bytes is None:
        # ~45 MiB on v7x (64 MiB/TC), ~90 MiB on v5e/v6e (128 MiB) -- never the
        # 16/32 MiB scoped default.
        vmem_limit_bytes = min(int(vmem_cap * 0.7), 96 << 20)
    budget = max(vmem_limit_bytes - (4 << 20), 4 << 20)      # pipeline/compiler headroom

    if num_splits is None:
        num_splits = _tensorcores_per_chip() if N >= 2048 else 1
    num_splits = max(1, int(num_splits))

    # Per-row: double-buffered x tile + f32 in-kernel temporaries.  Fixed: both
    # gate weights (double-buffered), accumulators/outputs, margin.
    per_row = 2 * C_pad * x_item + 4 * C_pad * 4 + 64
    fixed = 4 * K * C_pad * 4 + 3 * K * C_pad * 4 + (1 << 20)

    full_split = _round_up(_cdiv(N, num_splits), 8)
    if block_n is None:
        if fixed + per_row * full_split <= budget:
            block_n = full_split                              # whole split in one tile
        else:
            block_n = max(8, ((budget - fixed) // per_row) // 8 * 8)
    else:
        block_n = max(8, _round_up(int(block_n), 8))
    block_n = min(block_n, full_split)

    blocks_per_split = max(1, _cdiv(_cdiv(N, num_splits), block_n))
    n_per_split = blocks_per_split * block_n
    N_pad = n_per_split * num_splits
    if N_pad != N:
        x = jnp.pad(x, ((0, N_pad - N), (0, 0)))              # padded rows masked in-kernel

    kernel = _make_kernel(n_classes=K, c_pad=C_pad, block_n=block_n,
                          blocks_per_split=blocks_per_split, n_true=N, n_pad=N_pad,
                          mm_dtype=matmul_dtype, vpu_gate=vpu_gate)

    def fixed_spec(shape):
        return pl.BlockSpec(shape, lambda s, i: (0,) * len(shape))

    acc, m, l = pl.pallas_call(
        kernel,
        out_shape=(jax.ShapeDtypeStruct((num_splits, K, C_pad), jnp.float32),
                   jax.ShapeDtypeStruct((num_splits, 1, K), jnp.float32),
                   jax.ShapeDtypeStruct((num_splits, 1, K), jnp.float32)),
        grid_spec=pltpu.PrefetchScalarGridSpec(
            num_scalar_prefetch=0,
            grid=(num_splits, blocks_per_split),
            in_specs=[
                pl.BlockSpec((block_n, C_pad),
                             lambda s, i: (s * blocks_per_split + i, 0)),   # x tiles
                fixed_spec(wa.shape),                                       # folded W_a
                fixed_spec(wb.shape),                                       # folded W_b
                fixed_spec((1, K)),                                         # folded b_a
                fixed_spec((1, K)),                                         # folded b_b
            ],
            out_specs=[
                pl.BlockSpec((1, K, C_pad), lambda s, i: (s, 0, 0)),        # acc partial
                pl.BlockSpec((1, 1, K), lambda s, i: (s, 0, 0)),            # m partial
                pl.BlockSpec((1, 1, K), lambda s, i: (s, 0, 0)),            # l partial
            ],
            scratch_shapes=[
                pltpu.VMEM((1, K), jnp.float32),        # running max  m
                pltpu.VMEM((1, K), jnp.float32),        # running sum  l
                pltpu.VMEM((K, C_pad), jnp.float32),    # running acc
            ],
        ),
        compiler_params=pltpu.CompilerParams(
            dimension_semantics=("parallel", "arbitrary"),
            vmem_limit_bytes=int(vmem_limit_bytes)),
    )(x, wa, wb, ba, bb)

    # ---- Exact cross-split combine + softmax normalization (exact f32 divide). ----
    m_glob = jnp.max(m, axis=0)                               # (1, K)
    scale = jnp.exp(m - m_glob)                               # (S, 1, K)
    den = jnp.sum(scale * l, axis=0)                          # (1, K)
    num = jnp.sum(jnp.swapaxes(scale, 1, 2) * acc, axis=0)    # (K, C_pad)
    out = num / den.T
    return out[:, :C]


def init_params(key, inchannel, hidchannel, n_classes=1):
    ks = jax.random.split(key, 8)

    def uniform(k, shape, fan_in):
        bound = 1.0 / (fan_in ** 0.5)
        return jax.random.uniform(k, shape, jnp.float32, -bound, bound)

    return dict(
        # first layers stored as (in, out) so x @ W applies them
        w1a=uniform(ks[0], (inchannel, hidchannel), inchannel),
        b1a=uniform(ks[1], (1, hidchannel), inchannel),
        w1b=uniform(ks[2], (inchannel, hidchannel), inchannel),
        b1b=uniform(ks[3], (1, hidchannel), inchannel),
        # second layers stored in PyTorch (out, in) layout
        w2a=uniform(ks[4], (n_classes, hidchannel), hidchannel),
        b2a=uniform(ks[5], (1, n_classes), hidchannel),
        w2b=uniform(ks[6], (n_classes, hidchannel), hidchannel),
        b2b=uniform(ks[7], (1, n_classes), hidchannel),
    )


def reference_forward(x, p):
    """Pure-JAX reference mirroring the PyTorch module."""
    wa = jnp.tanh((x @ p["w1a"] + p["b1a"]) @ p["w2a"].T + p["b2a"])
    wb = jax.nn.sigmoid((x @ p["w1b"] + p["b1b"]) @ p["w2b"].T + p["b2b"])
    w = jax.nn.softmax((wa * wb).T, axis=1)
    return w @ x


if __name__ == "__main__":
    # Small shapes consistent with the module: N instances (one "bag"), C features.
    N, inchannel, hidchannel, n_classes = 256, 100, 32, 1

    key = jax.random.PRNGKey(0)
    kx, kp = jax.random.split(key)
    x = jax.random.normal(kx, (N, inchannel), jnp.float32)
    params = init_params(kp, inchannel, hidchannel, n_classes)

    # Tolerance covers MXU/XLA default matmul-precision differences on both sides
    # plus fp reassociation from the parameter fold and tile-order accumulation
    # (the approx reciprocal of the previous revision is gone).
    TOL = 2e-3

    # 1) Auto-tuned config: single split, whole-N tile (grid of 1), feature-dim
    #    lane padding 100 -> 128.
    out = jax.block_until_ready(aggregation_forward(x, params))
    ref = reference_forward(x, params)
    assert out.shape == (n_classes, inchannel)
    assert jnp.allclose(out, ref, atol=TOL, rtol=TOL), "auto config mismatch"

    # 2) Stress the multi-tile online-softmax reduction, the 2-way core split
    #    (parallel on v7x/megacore, sequential elsewhere) and the N-padding +
    #    in-kernel masking path (250 -> 256 rows).
    x2 = x[:250]
    out2 = jax.block_until_ready(
        aggregation_forward(x2, params, block_n=64, num_splits=2))
    ref2 = reference_forward(x2, params)
    assert jnp.allclose(out2, ref2, atol=TOL, rtol=TOL), "tiled/split config mismatch"

    print("KERNEL_OK")
</pallas_src>

<mosaic_0001>
module attributes {stable_mosaic.version = 11 : i64} {
  func.func @kernel(%arg0: i32, %arg1: i32, %arg2: memref<256x128xf32, #tpu.memory_space<vmem>>, %arg3: memref<1x128xf32, #tpu.memory_space<vmem>>, %arg4: memref<1x128xf32, #tpu.memory_space<vmem>>, %arg5: memref<1x1xf32, #tpu.memory_space<vmem>>, %arg6: memref<1x1xf32, #tpu.memory_space<vmem>>, %arg7: memref<1x1x128xf32, #tpu.memory_space<vmem>>, %arg8: memref<1x1x1xf32, #tpu.memory_space<vmem>>, %arg9: memref<1x1x1xf32, #tpu.memory_space<vmem>>, %arg10: memref<1x1xf32, #tpu.memory_space<vmem>>, %arg11: memref<1x1xf32, #tpu.memory_space<vmem>>, %arg12: memref<1x128xf32, #tpu.memory_space<vmem>>) attributes {dimension_semantics = [#tpu.dimension_semantics<parallel>, #tpu.dimension_semantics<arbitrary>], iteration_bounds = array<i64: 1, 1>, scalar_prefetch = 0 : i64, scratch_operands = 3 : i64, tpu.core_type = #tpu.core_type<tc>, window_params = [{transform_indices = @transform_0, window_bounds = array<i64: 256, 128>}, {pipeline_mode = #tpu.pipeline_mode<synchronous>, transform_indices = @transform_1, window_bounds = array<i64: 1, 128>}, {pipeline_mode = #tpu.pipeline_mode<synchronous>, transform_indices = @transform_2, window_bounds = array<i64: 1, 128>}, {pipeline_mode = #tpu.pipeline_mode<synchronous>, transform_indices = @transform_3, window_bounds = array<i64: 1, 1>}, {pipeline_mode = #tpu.pipeline_mode<synchronous>, transform_indices = @transform_4, window_bounds = array<i64: 1, 1>}, {transform_indices = @transform_5, window_bounds = array<i64: 1, 1, 128>}, {transform_indices = @transform_6, window_bounds = array<i64: 1, 1, 1>}, {transform_indices = @transform_7, window_bounds = array<i64: 1, 1, 1>}]} {
    %c0_i32 = arith.constant 0 : i32
    %0 = arith.cmpi eq, %arg1, %c0_i32 : i32
    %1 = arith.extui %0 : i1 to i32
    %c0_i32_0 = arith.constant 0 : i32
    %2 = arith.cmpi ne, %1, %c0_i32_0 : i32
    scf.if %2 {
      %cst_29 = arith.constant -1.000000e+00 : f32
      %53 = vector.broadcast %cst_29 : f32 to vector<1x1xf32>
      %c0_30 = arith.constant 0 : index
      %c0_31 = arith.constant 0 : index
      %54 = vector.load %arg10[%c0_30, %c0_31] : memref<1x1xf32, #tpu.memory_space<vmem>>, vector<1x1xf32>
      tpu.vector_store %arg10[%c0_30, %c0_31], %53 {strides = array<i32>} : memref<1x1xf32, #tpu.memory_space<vmem>>, vector<1x1xf32>,
      %cst_32 = arith.constant 0.000000e+00 : f32
      %55 = vector.broadcast %cst_32 : f32 to vector<1x1xf32>
      %c0_33 = arith.constant 0 : index
      %c0_34 = arith.constant 0 : index
      %56 = vector.load %arg11[%c0_33, %c0_34] : memref<1x1xf32, #tpu.memory_space<vmem>>, vector<1x1xf32>
      tpu.vector_store %arg11[%c0_33, %c0_34], %55 {strides = array<i32>} : memref<1x1xf32, #tpu.memory_space<vmem>>, vector<1x1xf32>,
      %cst_35 = arith.constant 0.000000e+00 : f32
      %57 = vector.broadcast %cst_35 : f32 to vector<1x128xf32>
      %c0_36 = arith.constant 0 : index
      %c0_37 = arith.constant 0 : index
      %58 = vector.load %arg12[%c0_36, %c0_37] : memref<1x128xf32, #tpu.memory_space<vmem>>, vector<1x128xf32>
      tpu.vector_store %arg12[%c0_36, %c0_37], %57 {strides = array<i32>} : memref<1x128xf32, #tpu.memory_space<vmem>>, vector<1x128xf32>,
    } else {
    }
    %c0 = arith.constant 0 : index
    %c0_1 = arith.constant 0 : index
    %3 = vector.load %arg2[%c0, %c0_1] : memref<256x128xf32, #tpu.memory_space<vmem>>, vector<256x128xf32>
    %c0_2 = arith.constant 0 : index
    %c0_3 = arith.constant 0 : index
    %4 = vector.load %arg3[%c0_2, %c0_3] : memref<1x128xf32, #tpu.memory_space<vmem>>, vector<1x128xf32>
    %5 = vector.broadcast %4 : vector<1x128xf32> to vector<256x128xf32>
    %6 = arith.mulf %3, %5 : vector<256x128xf32>
    %cst = arith.constant dense<0.000000e+00> : vector<256xf32>
    %7 = vector.multi_reduction <add>, %6, %cst [1] : vector<256x128xf32> to vector<256xf32>
    %8 = vector.shape_cast %7 : vector<256xf32> to vector<256x1xf32>
    %c0_4 = arith.constant 0 : index
    %c0_5 = arith.constant 0 : index
    %9 = vector.load %arg5[%c0_4, %c0_5] : memref<1x1xf32, #tpu.memory_space<vmem>>, vector<1x1xf32>
    %10 = vector.broadcast %9 : vector<1x1xf32> to vector<256x1xf32>
    %11 = arith.addf %8, %10 : vector<256x1xf32>
    %c0_6 = arith.constant 0 : index
    %c0_7 = arith.constant 0 : index
    %12 = vector.load %arg4[%c0_6, %c0_7] : memref<1x128xf32, #tpu.memory_space<vmem>>, vector<1x128xf32>
    %13 = vector.broadcast %12 : vector<1x128xf32> to vector<256x128xf32>
    %14 = arith.mulf %3, %13 : vector<256x128xf32>
    %cst_8 = arith.constant dense<0.000000e+00> : vector<256xf32>
    %15 = vector.multi_reduction <add>, %14, %cst_8 [1] : vector<256x128xf32> to vector<256xf32>
    %16 = vector.shape_cast %15 : vector<256xf32> to vector<256x1xf32>
    %c0_9 = arith.constant 0 : index
    %c0_10 = arith.constant 0 : index
    %17 = vector.load %arg6[%c0_9, %c0_10] : memref<1x1xf32, #tpu.memory_space<vmem>>, vector<1x1xf32>
    %18 = vector.broadcast %17 : vector<1x1xf32> to vector<256x1xf32>
    %19 = arith.addf %16, %18 : vector<256x1xf32>
    %20 = math.tanh %11 : vector<256x1xf32>
    %21 = arith.negf %19 : vector<256x1xf32>
    %22 = math.exp %21 : vector<256x1xf32>
    %cst_11 = arith.constant 1.000000e+00 : f32
    %23 = vector.broadcast %cst_11 : f32 to vector<256x1xf32>
    %24 = arith.addf %23, %22 : vector<256x1xf32>
    %25 = arith.divf %23, %24 : vector<256x1xf32>
    %26 = arith.mulf %20, %25 : vector<256x1xf32>
    %c0_12 = arith.constant 0 : index
    %c0_13 = arith.constant 0 : index
    %27 = vector.load %arg10[%c0_12, %c0_13] : memref<1x1xf32, #tpu.memory_space<vmem>>, vector<1x1xf32>
    %cst_14 = arith.constant dense<0xFF800000> : vector<1xf32>
    %28 = vector.multi_reduction <maximumf>, %26, %cst_14 [0] : vector<256x1xf32> to vector<1xf32>
    %29 = vector.shape_cast %28 : vector<1xf32> to vector<1x1xf32>
    %30 = arith.maximumf %27, %29 : vector<1x1xf32>
    %31 = arith.subf %27, %30 : vector<1x1xf32>
    %32 = math.exp %31 : vector<1x1xf32>
    %33 = vector.broadcast %30 : vector<1x1xf32> to vector<256x1xf32>
    %34 = arith.subf %26, %33 : vector<256x1xf32>
    %35 = math.exp %34 : vector<256x1xf32>
    %c0_15 = arith.constant 0 : index
    %c0_16 = arith.constant 0 : index
    %36 = vector.load %arg11[%c0_15, %c0_16] : memref<1x1xf32, #tpu.memory_space<vmem>>, vector<1x1xf32>
    %37 = arith.mulf %32, %36 : vector<1x1xf32>
    %cst_17 = arith.constant dense<0.000000e+00> : vector<1xf32>
    %38 = vector.multi_reduction <add>, %35, %cst_17 [0] : vector<256x1xf32> to vector<1xf32>
    %39 = vector.shape_cast %38 : vector<1xf32> to vector<1x1xf32>
    %40 = arith.addf %37, %39 : vector<1x1xf32>
    %c0_18 = arith.constant 0 : index
    %c0_19 = arith.constant 0 : index
    %41 = vector.load %arg11[%c0_18, %c0_19] : memref<1x1xf32, #tpu.memory_space<vmem>>, vector<1x1xf32>
    tpu.vector_store %arg11[%c0_18, %c0_19], %40 {strides = array<i32>} : memref<1x1xf32, #tpu.memory_space<vmem>>, vector<1x1xf32>,
    %cst_20 = arith.constant dense<0.000000e+00> : vector<1x128xf32>
    %42 = tpu.matmul %35, %3, %cst_20 {dimension_numbers = #tpu.dot_dimension_numbers<[0], [0], [1], [1], [0, 1, 1, 1], [], []>} : vector<256x1xf32>, vector<256x128xf32>, vector<1x128xf32> -> vector<1x128xf32>
    %43 = tpu.transpose %32, [1, 0] : vector<1x1xf32> -> vector<1x1xf32>
    %c0_21 = arith.constant 0 : index
    %c0_22 = arith.constant 0 : index
    %44 = vector.load %arg12[%c0_21, %c0_22] : memref<1x128xf32, #tpu.memory_space<vmem>>, vector<1x128xf32>
    %45 = vector.broadcast %43 : vector<1x1xf32> to vector<1x128xf32>
    %46 = arith.mulf %45, %44 : vector<1x128xf32>
    %47 = arith.addf %46, %42 : vector<1x128xf32>
    %c0_23 = arith.constant 0 : index
    %c0_24 = arith.constant 0 : index
    %48 = vector.load %arg12[%c0_23, %c0_24] : memref<1x128xf32, #tpu.memory_space<vmem>>, vector<1x128xf32>
    tpu.vector_store %arg12[%c0_23, %c0_24], %47 {strides = array<i32>} : memref<1x128xf32, #tpu.memory_space<vmem>>, vector<1x128xf32>,
    %c0_25 = arith.constant 0 : index
    %c0_26 = arith.constant 0 : index
    %49 = vector.load %arg10[%c0_25, %c0_26] : memref<1x1xf32, #tpu.memory_space<vmem>>, vector<1x1xf32>
    tpu.vector_store %arg10[%c0_25, %c0_26], %30 {strides = array<i32>} : memref<1x1xf32, #tpu.memory_space<vmem>>, vector<1x1xf32>,
    %c0_i32_27 = arith.constant 0 : i32
    %50 = arith.cmpi eq, %arg1, %c0_i32_27 : i32
    %51 = arith.extui %50 : i1 to i32
    %c0_i32_28 = arith.constant 0 : i32
    %52 = arith.cmpi ne, %51, %c0_i32_28 : i32
    scf.if %52 {
      %c0_29 = arith.constant 0 : index
      %c0_30 = arith.constant 0 : index
      %53 = vector.load %arg12[%c0_29, %c0_30] : memref<1x128xf32, #tpu.memory_space<vmem>>, vector<1x128xf32>
      %c0_31 = arith.constant 0 : index
      %c0_32 = arith.constant 0 : index
      %c0_33 = arith.constant 0 : index
      %54 = vector.load %arg7[%c0_31, %c0_32, %c0_33] : memref<1x1x128xf32, #tpu.memory_space<vmem>>, vector<1x1x128xf32>
      %55 = vector.shape_cast %54 : vector<1x1x128xf32> to vector<1x128xf32>
      %56 = vector.shape_cast %53 : vector<1x128xf32> to vector<1x1x128xf32>
      tpu.vector_store %arg7[%c0_31, %c0_32, %c0_33], %56 {strides = array<i32>} : memref<1x1x128xf32, #tpu.memory_space<vmem>>, vector<1x1x128xf32>,
      %c0_34 = arith.constant 0 : index
      %c0_35 = arith.constant 0 : index
      %57 = vector.load %arg10[%c0_34, %c0_35] : memref<1x1xf32, #tpu.memory_space<vmem>>, vector<1x1xf32>
      %c0_36 = arith.constant 0 : index
      %c0_37 = arith.constant 0 : index
      %c0_38 = arith.constant 0 : index
      %58 = vector.load %arg8[%c0_36, %c0_37, %c0_38] : memref<1x1x1xf32, #tpu.memory_space<vmem>>, vector<1x1x1xf32>
      %59 = vector.shape_cast %58 : vector<1x1x1xf32> to vector<1x1xf32>
      %60 = vector.shape_cast %57 : vector<1x1xf32> to vector<1x1x1xf32>
      tpu.vector_store %arg8[%c0_36, %c0_37, %c0_38], %60 {strides = array<i32>} : memref<1x1x1xf32, #tpu.memory_space<vmem>>, vector<1x1x1xf32>,
      %c0_39 = arith.constant 0 : index
      %c0_40 = arith.constant 0 : index
      %61 = vector.load %arg11[%c0_39, %c0_40] : memref<1x1xf32, #tpu.memory_space<vmem>>, vector<1x1xf32>
      %c0_41 = arith.constant 0 : index
      %c0_42 = arith.constant 0 : index
      %c0_43 = arith.constant 0 : index
      %62 = vector.load %arg9[%c0_41, %c0_42, %c0_43] : memref<1x1x1xf32, #tpu.memory_space<vmem>>, vector<1x1x1xf32>
      %63 = vector.shape_cast %62 : vector<1x1x1xf32> to vector<1x1xf32>
      %64 = vector.shape_cast %61 : vector<1x1xf32> to vector<1x1x1xf32>
      tpu.vector_store %arg9[%c0_41, %c0_42, %c0_43], %64 {strides = array<i32>} : memref<1x1x1xf32, #tpu.memory_space<vmem>>, vector<1x1x1xf32>,
    } else {
    }
    return
  }
  func.func @transform_0(%arg0: i32, %arg1: i32) -> (i32, i32) {
    %c1_i32 = arith.constant 1 : i32
    %0 = arith.muli %arg0, %c1_i32 : i32
    %1 = arith.addi %0, %arg1 : i32
    %c0_i32 = arith.constant 0 : i32
    %c0_i32_0 = arith.constant 0 : i32
    return %1, %c0_i32 : i32, i32
  }
  func.func @transform_1(%arg0: i32, %arg1: i32) -> (i32, i32) {
    %c0_i32 = arith.constant 0 : i32
    %c0_i32_0 = arith.constant 0 : i32
    %c0_i32_1 = arith.constant 0 : i32
    return %c0_i32, %c0_i32_0 : i32, i32
  }
  func.func @transform_2(%arg0: i32, %arg1: i32) -> (i32, i32) {
    %c0_i32 = arith.constant 0 : i32
    %c0_i32_0 = arith.constant 0 : i32
    %c0_i32_1 = arith.constant 0 : i32
    return %c0_i32, %c0_i32_0 : i32, i32
  }
  func.func @transform_3(%arg0: i32, %arg1: i32) -> (i32, i32) {
    %c0_i32 = arith.constant 0 : i32
    %c0_i32_0 = arith.constant 0 : i32
    %c0_i32_1 = arith.constant 0 : i32
    return %c0_i32, %c0_i32_0 : i32, i32
  }
  func.func @transform_4(%arg0: i32, %arg1: i32) -> (i32, i32) {
    %c0_i32 = arith.constant 0 : i32
    %c0_i32_0 = arith.constant 0 : i32
    %c0_i32_1 = arith.constant 0 : i32
    return %c0_i32, %c0_i32_0 : i32, i32
  }
  func.func @transform_5(%arg0: i32, %arg1: i32) -> (i32, i32, i32) {
    %c0_i32 = arith.constant 0 : i32
    %c0_i32_0 = arith.constant 0 : i32
    %c0_i32_1 = arith.constant 0 : i32
    return %arg0, %c0_i32, %c0_i32_0 : i32, i32, i32
  }
  func.func @transform_6(%arg0: i32, %arg1: i32) -> (i32, i32, i32) {
    %c0_i32 = arith.constant 0 : i32
    %c0_i32_0 = arith.constant 0 : i32
    %c0_i32_1 = arith.constant 0 : i32
    return %arg0, %c0_i32, %c0_i32_0 : i32, i32, i32
  }
  func.func @transform_7(%arg0: i32, %arg1: i32) -> (i32, i32, i32) {
    %c0_i32 = arith.constant 0 : i32
    %c0_i32_0 = arith.constant 0 : i32
    %c0_i32_1 = arith.constant 0 : i32
    return %arg0, %c0_i32, %c0_i32_0 : i32, i32, i32
  }
}

</mosaic_0001>

<llo_original>
// kernel: tpu_custom_call.1
$region0: #{tpu_custom_call.1}
  #allocation0 [shape = 'u32[]', space=smem, size = 0x4, offset = 0x4, fixed_abs, tag = 'smem constant byte address 0x4 - core index']
  #allocation1 [shape = 'u32[72,128]{1,0:T(1,128)}', space=vmem, size = 0x9000, scoped, tag = 'internal scratch']
  #allocation2 [shape = 'f32[1,1]{1,0:T(1,128)}', space=vmem, size = 0x200, scoped, tag = 'scratch operand']
  #allocation3 [shape = 'f32[1,1]{1,0:T(1,128)}', space=vmem, size = 0x200, scoped, tag = 'scratch operand']
  #allocation4 [shape = 'f32[1,128]{1,0:T(1,128)}', space=vmem, size = 0x200, scoped, tag = 'scratch operand']
  #allocation5 [shape = 'f32[1,1]{1,0:T(1,128)S(1)}', space=vmem, size = 0x200, scoped, tag = 'scoped memory for tpu_custom_call.1']
  #allocation6 [shape = 'f32[1,1]{1,0:T(1,128)S(1)}', space=vmem, size = 0x200, scoped, tag = 'scoped memory for tpu_custom_call.1']
  %s0 = inlined_call_operand.hbm [shape: f32[256,128], index: 0, kind: input, shape index: {}]
  %s1 = inlined_call_operand.vmem [shape: f32[1,128], index: 1, kind: input, shape index: {}]
  %s2 = inlined_call_operand.vmem [shape: f32[1,128], index: 2, kind: input, shape index: {}]
  %s3 = inlined_call_operand.<no memory space> [shape: f32[1,1], index: 3, kind: input, shape index: {}]
  %s4 = inlined_call_operand.<no memory space> [shape: f32[1,1], index: 4, kind: input, shape index: {}]
  %s5 = inlined_call_operand.hbm [shape: f32[1,1,128], index: 5, kind: output, shape index: {0}]
  %s6 = inlined_call_operand.hbm [shape: f32[1,1,1], index: 6, kind: output, shape index: {1}]
  %s7 = inlined_call_operand.hbm [shape: f32[1,1,1], index: 7, kind: output, shape index: {2}]
  %8 = xla_tuple %s5, %s6, %s7
  %s9 = sld [smem:[#allocation0]]
  $region58: #{tpu_custom_call.1} parent=0
    _
  %s11 = ssub.s32 1, %s9
  %s12 = scalar_select 0, %s11, %s9
  %v13 = vstv %s3
  %14 = vst [vmem:[#allocation5] sm:$0x1] %v13
  %v15 = vstv %s4
  %16 = vst [vmem:[#allocation6] sm:$0x1] %v15
  $region1: #{tpu_custom_call.1} parent=0
    #allocation7 [shape = 'u8[131072]{0}', space=vmem, size = 0x20000, scoped, tag = 'input window, operand 0, single buffered']
    #allocation8 [shape = 's32[1]{0}', space=sflag, size = 0x4, scoped, tag = 'scoped memory for tpu_custom_call.1']
    #allocation9 [shape = 's32[1]{0}', space=sflag, size = 0x4, scoped, tag = 'scoped memory for tpu_custom_call.1']
    #allocation10 [shape = 'u8[512]{0}', space=vmem, size = 0x400, scoped, tag = 'output window, operand 0, single buffered']
    #allocation11 [shape = 'u8[512]{0}', space=vmem, size = 0x400, scoped, tag = 'output window, operand 1, single buffered']
    #allocation12 [shape = 's32[1]{0}', space=sflag, size = 0x4, scoped, tag = 'scoped memory for tpu_custom_call.1']
    #allocation13 [shape = 'u8[512]{0}', space=vmem, size = 0x400, scoped, tag = 'output window, operand 2, single buffered']
    %17 = vsyncpa [#allocation8], 0
    %18 = vsyncpa [#allocation9], 0
    %19 = vsyncpa [#allocation12], 0
    // Predicated region
    $region2: #{tpu_custom_call.1} parent=1 // pred_check
      _
    $region3: #{tpu_custom_call.1} parent=1 // pred_check_branch
      %21 = sbr.rel (0) target = $region5
    $region4: #{tpu_custom_call.1} parent=1 // pred_region
      %s22 = sadd.s32 0, 0
      %s23 = smul.u32 32, %s22
      %25 = vsyncadd [#allocation8], 0
      %s26 = smul.addr %s23, 8
      %s27 = scalar_lea.hbm %s0, %s26
      %s28 = sshll.u32 %s27, 4
      %s29 = int_to_ptr.hbm [resolvable:$true] %s28
      %s30 = sshll.u32 [#allocation7], 4
      %s31 = int_to_ptr.vmem [resolvable:$true] %s30
      %36 = dma.hbm_to_vmem [thread:$0]  %s29, 4096, %s31, [#allocation8], 128, 128, 8
    $region5: #{tpu_custom_call.1} parent=1 // pred_fallthru
      _
    // Predicated region
    $region6: #{tpu_custom_call.1} parent=1 // pred_check
      _
    $region7: #{tpu_custom_call.1} parent=1 // pred_check_branch
      %38 = sbr.rel (0) target = $region9
    $region8: #{tpu_custom_call.1} parent=1 // pred_region
      _
    $region9: #{tpu_custom_call.1} parent=1 // pred_fallthru
      _
    // Predicated region
    $region10: #{tpu_custom_call.1} parent=1 // pred_check
      _
    $region11: #{tpu_custom_call.1} parent=1 // pred_check_branch
      %40 = sbr.rel (0) target = $region13
    $region12: #{tpu_custom_call.1} parent=1 // pred_region
      _
    $region13: #{tpu_custom_call.1} parent=1 // pred_fallthru
      _
    // Predicated region
    $region14: #{tpu_custom_call.1} parent=1 // pred_check
      _
    $region15: #{tpu_custom_call.1} parent=1 // pred_check_branch
      %42 = sbr.rel (0) target = $region17
    $region16: #{tpu_custom_call.1} parent=1 // pred_region
      _
    $region17: #{tpu_custom_call.1} parent=1 // pred_fallthru
      _
    // Predicated region
    $region18: #{tpu_custom_call.1} parent=1 // pred_check
      _
    $region19: #{tpu_custom_call.1} parent=1 // pred_check_branch
      %44 = sbr.rel (0) target = $region21
    $region20: #{tpu_custom_call.1} parent=1 // pred_region
      _
    $region21: #{tpu_custom_call.1} parent=1 // pred_fallthru
      _
    // Predicated region
    $region22: #{tpu_custom_call.1} parent=1 // pred_check
      _
    $region23: #{tpu_custom_call.1} parent=1 // pred_check_branch
      %46 = sbr.rel (0) target = $region25
    $region24: #{tpu_custom_call.1} parent=1 // pred_region
      %48 = dma.done [#allocation8], 4096
    $region25: #{tpu_custom_call.1} parent=1 // pred_fallthru
      _
    %s49 = sadd.s32 0, 0
    %s50 = smul.u32 32, %s49
    %p51 = scmp.eq.s32.totalorder 0, 0
    // Predicated region
    $region26: #{tpu_custom_call.1} parent=1 // pred_check
      %p52 = pneg %p51
    $region27: #{tpu_custom_call.1} parent=1 // pred_check_branch
      %54 = sbr.rel (%p52) target = $region29
    $region28: #{tpu_custom_call.1} parent=1 // pred_region
      %vm55 = vcmask 0
      %56 = vst.msk [vmem:[#allocation2] sm:$0x1] %vm55, -1.0
      %57 = vst.msk [vmem:[#allocation3] sm:$0x1] %vm55, 0.0
      %58 = vst [vmem:[#allocation4] sm:$0x1] 0.0
    $region29: #{tpu_custom_call.1} parent=1 // pred_fallthru
      _
    %v59 = vld [vmem:[#allocation7] sm:$0xff]
    %v60 = vld [vmem:[#allocation7 + $0x8] sm:$0xff]
    %v61 = vld [vmem:[#allocation7 + $0x10] sm:$0xff]
    %v62 = vld [vmem:[#allocation7 + $0x18] sm:$0xff]
    %v63 = vld [vmem:[#allocation7 + $0x20] sm:$0xff]
    %v64 = vld [vmem:[#allocation7 + $0x28] sm:$0xff]
    %v65 = vld [vmem:[#allocation7 + $0x30] sm:$0xff]
    %v66 = vld [vmem:[#allocation7 + $0x38] sm:$0xff]
    %v67 = vld [vmem:[#allocation7 + $0x40] sm:$0xff]
    %v68 = vld [vmem:[#allocation7 + $0x48] sm:$0xff]
    %v69 = vld [vmem:[#allocation7 + $0x50] sm:$0xff]
    %v70 = vld [vmem:[#allocation7 + $0x58] sm:$0xff]
    %v71 = vld [vmem:[#allocation7 + $0x60] sm:$0xff]
    %v72 = vld [vmem:[#allocation7 + $0x68] sm:$0xff]
    %v73 = vld [vmem:[#allocation7 + $0x70] sm:$0xff]
    %v74 = vld [vmem:[#allocation7 + $0x78] sm:$0xff]
    %v75 = vld [vmem:[#allocation7 + $0x80] sm:$0xff]
    %v76 = vld [vmem:[#allocation7 + $0x88] sm:$0xff]
    %v77 = vld [vmem:[#allocation7 + $0x90] sm:$0xff]
    %v78 = vld [vmem:[#allocation7 + $0x98] sm:$0xff]
    %v79 = vld [vmem:[#allocation7 + $0xa0] sm:$0xff]
    %v80 = vld [vmem:[#allocation7 + $0xa8] sm:$0xff]
    %v81 = vld [vmem:[#allocation7 + $0xb0] sm:$0xff]
    %v82 = vld [vmem:[#allocation7 + $0xb8] sm:$0xff]
    %v83 = vld [vmem:[#allocation7 + $0xc0] sm:$0xff]
    %v84 = vld [vmem:[#allocation7 + $0xc8] sm:$0xff]
    %v85 = vld [vmem:[#allocation7 + $0xd0] sm:$0xff]
    %v86 = vld [vmem:[#allocation7 + $0xd8] sm:$0xff]
    %v87 = vld [vmem:[#allocation7 + $0xe0] sm:$0xff]
    %v88 = vld [vmem:[#allocation7 + $0xe8] sm:$0xff]
    %v89 = vld [vmem:[#allocation7 + $0xf0] sm:$0xff]
    %v90 = vld [vmem:[#allocation7 + $0xf8] sm:$0xff]
    %v91 = vld [vmem:[%s1] sm:$0x1]
    %v93 = vperm.slane %v91, 0
    %v95 = vmul.f32 %v59, %v93
    %v96 = vmul.f32 %v60, %v93
    %v97 = vmul.f32 %v61, %v93
    %v98 = vmul.f32 %v62, %v93
    %v99 = vmul.f32 %v63, %v93
    %v100 = vmul.f32 %v64, %v93
    %v101 = vmul.f32 %v65, %v93
    %v102 = vmul.f32 %v66, %v93
    %v103 = vmul.f32 %v67, %v93
    %v104 = vmul.f32 %v68, %v93
    %v105 = vmul.f32 %v69, %v93
    %v106 = vmul.f32 %v70, %v93
    %v107 = vmul.f32 %v71, %v93
    %v108 = vmul.f32 %v72, %v93
    %v109 = vmul.f32 %v73, %v93
    %v110 = vmul.f32 %v74, %v93
    %v111 = vmul.f32 %v75, %v93
    %v112 = vmul.f32 %v76, %v93
    %v113 = vmul.f32 %v77, %v93
    %v114 = vmul.f32 %v78, %v93
    %v115 = vmul.f32 %v79, %v93
    %v116 = vmul.f32 %v80, %v93
    %v117 = vmul.f32 %v81, %v93
    %v118 = vmul.f32 %v82, %v93
    %v119 = vmul.f32 %v83, %v93
    %v120 = vmul.f32 %v84, %v93
    %v121 = vmul.f32 %v85, %v93
    %v122 = vmul.f32 %v86, %v93
    %v123 = vmul.f32 %v87, %v93
    %v124 = vmul.f32 %v88, %v93
    %v125 = vmul.f32 %v89, %v93
    %v126 = vmul.f32 %v90, %v93
    %127 = vadd.xlane.f32.xlu0 %v95
    %v128 = vpop.xlane.xlu0 %127
    %129 = vadd.xlane.f32.xlu0 %v96
    %v130 = vpop.xlane.xlu0 %129
    %131 = vadd.xlane.f32.xlu0 %v97
    %v132 = vpop.xlane.xlu0 %131
    %133 = vadd.xlane.f32.xlu0 %v98
    %v134 = vpop.xlane.xlu0 %133
    %135 = vadd.xlane.f32.xlu0 %v99
    %v136 = vpop.xlane.xlu0 %135
    %137 = vadd.xlane.f32.xlu0 %v100
    %v138 = vpop.xlane.xlu0 %137
    %139 = vadd.xlane.f32.xlu0 %v101
    %v140 = vpop.xlane.xlu0 %139
    %141 = vadd.xlane.f32.xlu0 %v102
    %v142 = vpop.xlane.xlu0 %141
    %143 = vadd.xlane.f32.xlu0 %v103
    %v144 = vpop.xlane.xlu0 %143
    %145 = vadd.xlane.f32.xlu0 %v104
    %v146 = vpop.xlane.xlu0 %145
    %147 = vadd.xlane.f32.xlu0 %v105
    %v148 = vpop.xlane.xlu0 %147
    %149 = vadd.xlane.f32.xlu0 %v106
    %v150 = vpop.xlane.xlu0 %149
    %151 = vadd.xlane.f32.xlu0 %v107
    %v152 = vpop.xlane.xlu0 %151
    %153 = vadd.xlane.f32.xlu0 %v108
    %v154 = vpop.xlane.xlu0 %153
    %155 = vadd.xlane.f32.xlu0 %v109
    %v156 = vpop.xlane.xlu0 %155
    %157 = vadd.xlane.f32.xlu0 %v110
    %v158 = vpop.xlane.xlu0 %157
    %159 = vadd.xlane.f32.xlu0 %v111
    %v160 = vpop.xlane.xlu0 %159
    %161 = vadd.xlane.f32.xlu0 %v112
    %v162 = vpop.xlane.xlu0 %161
    %163 = vadd.xlane.f32.xlu0 %v113
    %v164 = vpop.xlane.xlu0 %163
    %165 = vadd.xlane.f32.xlu0 %v114
    %v166 = vpop.xlane.xlu0 %165
    %167 = vadd.xlane.f32.xlu0 %v115
    %v168 = vpop.xlane.xlu0 %167
    %169 = vadd.xlane.f32.xlu0 %v116
    %v170 = vpop.xlane.xlu0 %169
    %171 = vadd.xlane.f32.xlu0 %v117
    %v172 = vpop.xlane.xlu0 %171
    %173 = vadd.xlane.f32.xlu0 %v118
    %v174 = vpop.xlane.xlu0 %173
    %175 = vadd.xlane.f32.xlu0 %v119
    %v176 = vpop.xlane.xlu0 %175
    %177 = vadd.xlane.f32.xlu0 %v120
    %v178 = vpop.xlane.xlu0 %177
    %179 = vadd.xlane.f32.xlu0 %v121
    %v180 = vpop.xlane.xlu0 %179
    %181 = vadd.xlane.f32.xlu0 %v122
    %v182 = vpop.xlane.xlu0 %181
    %183 = vadd.xlane.f32.xlu0 %v123
    %v184 = vpop.xlane.xlu0 %183
    %185 = vadd.xlane.f32.xlu0 %v124
    %v186 = vpop.xlane.xlu0 %185
    %187 = vadd.xlane.f32.xlu0 %v125
    %v188 = vpop.xlane.xlu0 %187
    %189 = vadd.xlane.f32.xlu0 %v126
    %v190 = vpop.xlane.xlu0 %189
    %v191 = vld [vmem:[#allocation5] sm:$0x1]
    %v193 = vperm.slane %v191, 0
    %v195 = vadd.f32 %v128, %v193
    %v196 = vadd.f32 %v130, %v193
    %v197 = vadd.f32 %v132, %v193
    %v198 = vadd.f32 %v134, %v193
    %v199 = vadd.f32 %v136, %v193
    %v200 = vadd.f32 %v138, %v193
    %v201 = vadd.f32 %v140, %v193
    %v202 = vadd.f32 %v142, %v193
    %v203 = vadd.f32 %v144, %v193
    %v204 = vadd.f32 %v146, %v193
    %v205 = vadd.f32 %v148, %v193
    %v206 = vadd.f32 %v150, %v193
    %v207 = vadd.f32 %v152, %v193
    %v208 = vadd.f32 %v154, %v193
    %v209 = vadd.f32 %v156, %v193
    %v210 = vadd.f32 %v158, %v193
    %v211 = vadd.f32 %v160, %v193
    %v212 = vadd.f32 %v162, %v193
    %v213 = vadd.f32 %v164, %v193
    %v214 = vadd.f32 %v166, %v193
    %v215 = vadd.f32 %v168, %v193
    %v216 = vadd.f32 %v170, %v193
    %v217 = vadd.f32 %v172, %v193
    %v218 = vadd.f32 %v174, %v193
    %v219 = vadd.f32 %v176, %v193
    %v220 = vadd.f32 %v178, %v193
    %v221 = vadd.f32 %v180, %v193
    %v222 = vadd.f32 %v182, %v193
    %v223 = vadd.f32 %v184, %v193
    %v224 = vadd.f32 %v186, %v193
    %v225 = vadd.f32 %v188, %v193
    %v226 = vadd.f32 %v190, %v193
    %v227 = vld [vmem:[%s2] sm:$0x1]
    %v229 = vperm.slane %v227, 0
    %v231 = vmul.f32 %v59, %v229
    %v232 = vmul.f32 %v60, %v229
    %v233 = vmul.f32 %v61, %v229
    %v234 = vmul.f32 %v62, %v229
    %v235 = vmul.f32 %v63, %v229
    %v236 = vmul.f32 %v64, %v229
    %v237 = vmul.f32 %v65, %v229
    %v238 = vmul.f32 %v66, %v229
    %v239 = vmul.f32 %v67, %v229
    %v240 = vmul.f32 %v68, %v229
    %v241 = vmul.f32 %v69, %v229
    %v242 = vmul.f32 %v70, %v229
    %v243 = vmul.f32 %v71, %v229
    %v244 = vmul.f32 %v72, %v229
    %v245 = vmul.f32 %v73, %v229
    %v246 = vmul.f32 %v74, %v229
    %v247 = vmul.f32 %v75, %v229
    %v248 = vmul.f32 %v76, %v229
    %v249 = vmul.f32 %v77, %v229
    %v250 = vmul.f32 %v78, %v229
    %v251 = vmul.f32 %v79, %v229
    %v252 = vmul.f32 %v80, %v229
    %v253 = vmul.f32 %v81, %v229
    %v254 = vmul.f32 %v82, %v229
    %v255 = vmul.f32 %v83, %v229
    %v256 = vmul.f32 %v84, %v229
    %v257 = vmul.f32 %v85, %v229
    %v258 = vmul.f32 %v86, %v229
    %v259 = vmul.f32 %v87, %v229
    %v260 = vmul.f32 %v88, %v229
    %v261 = vmul.f32 %v89, %v229
    %v262 = vmul.f32 %v90, %v229
    %263 = vadd.xlane.f32.xlu0 %v231
    %v264 = vpop.xlane.xlu0 %263
    %265 = vadd.xlane.f32.xlu0 %v232
    %v266 = vpop.xlane.xlu0 %265
    %267 = vadd.xlane.f32.xlu0 %v233
    %v268 = vpop.xlane.xlu0 %267
    %269 = vadd.xlane.f32.xlu0 %v234
    %v270 = vpop.xlane.xlu0 %269
    %271 = vadd.xlane.f32.xlu0 %v235
    %v272 = vpop.xlane.xlu0 %271
    %273 = vadd.xlane.f32.xlu0 %v236
    %v274 = vpop.xlane.xlu0 %273
    %275 = vadd.xlane.f32.xlu0 %v237
    %v276 = vpop.xlane.xlu0 %275
    %277 = vadd.xlane.f32.xlu0 %v238
    %v278 = vpop.xlane.xlu0 %277
    %279 = vadd.xlane.f32.xlu0 %v239
    %v280 = vpop.xlane.xlu0 %279
    %281 = vadd.xlane.f32.xlu0 %v240
    %v282 = vpop.xlane.xlu0 %281
    %283 = vadd.xlane.f32.xlu0 %v241
    %v284 = vpop.xlane.xlu0 %283
    %285 = vadd.xlane.f32.xlu0 %v242
    %v286 = vpop.xlane.xlu0 %285
    %287 = vadd.xlane.f32.xlu0 %v243
    %v288 = vpop.xlane.xlu0 %287
    %289 = vadd.xlane.f32.xlu0 %v244
    %v290 = vpop.xlane.xlu0 %289
    %291 = vadd.xlane.f32.xlu0 %v245
    %v292 = vpop.xlane.xlu0 %291
    %293 = vadd.xlane.f32.xlu0 %v246
    %v294 = vpop.xlane.xlu0 %293
    %295 = vadd.xlane.f32.xlu0 %v247
    %v296 = vpop.xlane.xlu0 %295
    %297 = vadd.xlane.f32.xlu0 %v248
    %v298 = vpop.xlane.xlu0 %297
    %299 = vadd.xlane.f32.xlu0 %v249
    %v300 = vpop.xlane.xlu0 %299
    %301 = vadd.xlane.f32.xlu0 %v250
    %v302 = vpop.xlane.xlu0 %301
    %303 = vadd.xlane.f32.xlu0 %v251
    %v304 = vpop.xlane.xlu0 %303
    %305 = vadd.xlane.f32.xlu0 %v252
    %v306 = vpop.xlane.xlu0 %305
    %307 = vadd.xlane.f32.xlu0 %v253
    %v308 = vpop.xlane.xlu0 %307
    %309 = vadd.xlane.f32.xlu0 %v254
    %v310 = vpop.xlane.xlu0 %309
    %311 = vadd.xlane.f32.xlu0 %v255
    %v312 = vpop.xlane.xlu0 %311
    %313 = vadd.xlane.f32.xlu0 %v256
    %v314 = vpop.xlane.xlu0 %313
    %315 = vadd.xlane.f32.xlu0 %v257
    %v316 = vpop.xlane.xlu0 %315
    %317 = vadd.xlane.f32.xlu0 %v258
    %v318 = vpop.xlane.xlu0 %317
    %319 = vadd.xlane.f32.xlu0 %v259
    %v320 = vpop.xlane.xlu0 %319
    %321 = vadd.xlane.f32.xlu0 %v260
    %v322 = vpop.xlane.xlu0 %321
    %323 = vadd.xlane.f32.xlu0 %v261
    %v324 = vpop.xlane.xlu0 %323
    %325 = vadd.xlane.f32.xlu0 %v262
    %v326 = vpop.xlane.xlu0 %325
    %v327 = vld [vmem:[#allocation6] sm:$0x1]
    %v329 = vperm.slane %v327, 0
    %v331 = vadd.f32 %v264, %v329
    %v332 = vadd.f32 %v266, %v329
    %v333 = vadd.f32 %v268, %v329
    %v334 = vadd.f32 %v270, %v329
    %v335 = vadd.f32 %v272, %v329
    %v336 = vadd.f32 %v274, %v329
    %v337 = vadd.f32 %v276, %v329
    %v338 = vadd.f32 %v278, %v329
    %v339 = vadd.f32 %v280, %v329
    %v340 = vadd.f32 %v282, %v329
    %v341 = vadd.f32 %v284, %v329
    %v342 = vadd.f32 %v286, %v329
    %v343 = vadd.f32 %v288, %v329
    %v344 = vadd.f32 %v290, %v329
    %v345 = vadd.f32 %v292, %v329
    %v346 = vadd.f32 %v294, %v329
    %v347 = vadd.f32 %v296, %v329
    %v348 = vadd.f32 %v298, %v329
    %v349 = vadd.f32 %v300, %v329
    %v350 = vadd.f32 %v302, %v329
    %v351 = vadd.f32 %v304, %v329
    %v352 = vadd.f32 %v306, %v329
    %v353 = vadd.f32 %v308, %v329
    %v354 = vadd.f32 %v310, %v329
    %v355 = vadd.f32 %v312, %v329
    %v356 = vadd.f32 %v314, %v329
    %v357 = vadd.f32 %v316, %v329
    %v358 = vadd.f32 %v318, %v329
    %v359 = vadd.f32 %v320, %v329
    %v360 = vadd.f32 %v322, %v329
    %v361 = vadd.f32 %v324, %v329
    %v362 = vadd.f32 %v326, %v329
    %v363 = vtanh.pop %v195
    %v364 = vtanh.pop %v196
    %v365 = vtanh.pop %v197
    %v366 = vtanh.pop %v198
    %v367 = vtanh.pop %v199
    %v368 = vtanh.pop %v200
    %v369 = vtanh.pop %v201
    %v370 = vtanh.pop %v202
    %v371 = vtanh.pop %v203
    %v372 = vtanh.pop %v204
    %v373 = vtanh.pop %v205
    %v374 = vtanh.pop %v206
    %v375 = vtanh.pop %v207
    %v376 = vtanh.pop %v208
    %v377 = vtanh.pop %v209
    %v378 = vtanh.pop %v210
    %v379 = vtanh.pop %v211
    %v380 = vtanh.pop %v212
    %v381 = vtanh.pop %v213
    %v382 = vtanh.pop %v214
    %v383 = vtanh.pop %v215
    %v384 = vtanh.pop %v216
    %v385 = vtanh.pop %v217
    %v386 = vtanh.pop %v218
    %v387 = vtanh.pop %v219
    %v388 = vtanh.pop %v220
    %v389 = vtanh.pop %v221
    %v390 = vtanh.pop %v222
    %v391 = vtanh.pop %v223
    %v392 = vtanh.pop %v224
    %v393 = vtanh.pop %v225
    %v394 = vtanh.pop %v226
    %v395 = vxor.u32 %v331, 2147483648
    %v396 = vxor.u32 %v332, 2147483648
    %v397 = vxor.u32 %v333, 2147483648
    %v398 = vxor.u32 %v334, 2147483648
    %v399 = vxor.u32 %v335, 2147483648
    %v400 = vxor.u32 %v336, 2147483648
    %v401 = vxor.u32 %v337, 2147483648
    %v402 = vxor.u32 %v338, 2147483648
    %v403 = vxor.u32 %v339, 2147483648
    %v404 = vxor.u32 %v340, 2147483648
    %v405 = vxor.u32 %v341, 2147483648
    %v406 = vxor.u32 %v342, 2147483648
    %v407 = vxor.u32 %v343, 2147483648
    %v408 = vxor.u32 %v344, 2147483648
    %v409 = vxor.u32 %v345, 2147483648
    %v410 = vxor.u32 %v346, 2147483648
    %v411 = vxor.u32 %v347, 2147483648
    %v412 = vxor.u32 %v348, 2147483648
    %v413 = vxor.u32 %v349, 2147483648
    %v414 = vxor.u32 %v350, 2147483648
    %v415 = vxor.u32 %v351, 2147483648
    %v416 = vxor.u32 %v352, 2147483648
    %v417 = vxor.u32 %v353, 2147483648
    %v418 = vxor.u32 %v354, 2147483648
    %v419 = vxor.u32 %v355, 2147483648
    %v420 = vxor.u32 %v356, 2147483648
    %v421 = vxor.u32 %v357, 2147483648
    %v422 = vxor.u32 %v358, 2147483648
    %v423 = vxor.u32 %v359, 2147483648
    %v424 = vxor.u32 %v360, 2147483648
    %v425 = vxor.u32 %v361, 2147483648
    %v426 = vxor.u32 %v362, 2147483648
    %v427 = vmul.f32 %v395, 1.442695
    %v428 = vpow.pop %v427
    %v429 = vmul.f32 %v396, 1.442695
    %v430 = vpow.pop %v429
    %v431 = vmul.f32 %v397, 1.442695
    %v432 = vpow.pop %v431
    %v433 = vmul.f32 %v398, 1.442695
    %v434 = vpow.pop %v433
    %v435 = vmul.f32 %v399, 1.442695
    %v436 = vpow.pop %v435
    %v437 = vmul.f32 %v400, 1.442695
    %v438 = vpow.pop %v437
    %v439 = vmul.f32 %v401, 1.442695
    %v440 = vpow.pop %v439
    %v441 = vmul.f32 %v402, 1.442695
    %v442 = vpow.pop %v441
    %v443 = vmul.f32 %v403, 1.442695
    %v444 = vpow.pop %v443
    %v445 = vmul.f32 %v404, 1.442695
    %v446 = vpow.pop %v445
    %v447 = vmul.f32 %v405, 1.442695
    %v448 = vpow.pop %v447
    %v449 = vmul.f32 %v406, 1.442695
    %v450 = vpow.pop %v449
    %v451 = vmul.f32 %v407, 1.442695
    %v452 = vpow.pop %v451
    %v453 = vmul.f32 %v408, 1.442695
    %v454 = vpow.pop %v453
    %v455 = vmul.f32 %v409, 1.442695
    %v456 = vpow.pop %v455
    %v457 = vmul.f32 %v410, 1.442695
    %v458 = vpow.pop %v457
    %v459 = vmul.f32 %v411, 1.442695
    %v460 = vpow.pop %v459
    %v461 = vmul.f32 %v412, 1.442695
    %v462 = vpow.pop %v461
    %v463 = vmul.f32 %v413, 1.442695
    %v464 = vpow.pop %v463
    %v465 = vmul.f32 %v414, 1.442695
    %v466 = vpow.pop %v465
    %v467 = vmul.f32 %v415, 1.442695
    %v468 = vpow.pop %v467
    %v469 = vmul.f32 %v416, 1.442695
    %v470 = vpow.pop %v469
    %v471 = vmul.f32 %v417, 1.442695
    %v472 = vpow.pop %v471
    %v473 = vmul.f32 %v418, 1.442695
    %v474 = vpow.pop %v473
    %v475 = vmul.f32 %v419, 1.442695
    %v476 = vpow.pop %v475
    %v477 = vmul.f32 %v420, 1.442695
    %v478 = vpow.pop %v477
    %v479 = vmul.f32 %v421, 1.442695
    %v480 = vpow.pop %v479
    %v481 = vmul.f32 %v422, 1.442695
    %v482 = vpow.pop %v481
    %v483 = vmul.f32 %v423, 1.442695
    %v484 = vpow.pop %v483
    %v485 = vmul.f32 %v424, 1.442695
    %v486 = vpow.pop %v485
    %v487 = vmul.f32 %v425, 1.442695
    %v488 = vpow.pop %v487
    %v489 = vmul.f32 %v426, 1.442695
    %v490 = vpow.pop %v489
    %v491 = vadd.f32 %v428, 1.0
    %v492 = vadd.f32 %v430, 1.0
    %v493 = vadd.f32 %v432, 1.0
    %v494 = vadd.f32 %v434, 1.0
    %v495 = vadd.f32 %v436, 1.0
    %v496 = vadd.f32 %v438, 1.0
    %v497 = vadd.f32 %v440, 1.0
    %v498 = vadd.f32 %v442, 1.0
    %v499 = vadd.f32 %v444, 1.0
    %v500 = vadd.f32 %v446, 1.0
    %v501 = vadd.f32 %v448, 1.0
    %v502 = vadd.f32 %v450, 1.0
    %v503 = vadd.f32 %v452, 1.0
    %v504 = vadd.f32 %v454, 1.0
    %v505 = vadd.f32 %v456, 1.0
    %v506 = vadd.f32 %v458, 1.0
    %v507 = vadd.f32 %v460, 1.0
    %v508 = vadd.f32 %v462, 1.0
    %v509 = vadd.f32 %v464, 1.0
    %v510 = vadd.f32 %v466, 1.0
    %v511 = vadd.f32 %v468, 1.0
    %v512 = vadd.f32 %v470, 1.0
    %v513 = vadd.f32 %v472, 1.0
    %v514 = vadd.f32 %v474, 1.0
    %v515 = vadd.f32 %v476, 1.0
    %v516 = vadd.f32 %v478, 1.0
    %v517 = vadd.f32 %v480, 1.0
    %v518 = vadd.f32 %v482, 1.0
    %v519 = vadd.f32 %v484, 1.0
    %v520 = vadd.f32 %v486, 1.0
    %v521 = vadd.f32 %v488, 1.0
    %v522 = vadd.f32 %v490, 1.0
    %v523 = vrcp.pop %v491
    %v524 = vmul.f32 %v491, %v523
    %v525 = vsub.f32 1.0, %v524
    %v526 = vmul.f32 %v523, %v525
    %v527 = vadd.f32 %v523, %v526
    %vm528 = vweird.f32 %v491
    %vm529 = vweird.f32 %v523
    %vm530 = vmor %vm528, %vm529
    %v531 = vsel %vm530, %v523, %v527
    %v532 = vand.u32 2147483647, %v491
    %vm533 = vcmp.eq.f32.partialorder %v532, 8.507059e+37
    %v534 = vand.u32 %v491, 2147483648
    %v535 = vor.u32 1.1754944e-38, %v534
    %v536 = vsel %vm533, %v535, %v531
    %v537 = vmul.f32 1.0, %v536
    %v538 = vrcp.pop %v492
    %v539 = vmul.f32 %v492, %v538
    %v540 = vsub.f32 1.0, %v539
    %v541 = vmul.f32 %v538, %v540
    %v542 = vadd.f32 %v538, %v541
    %vm543 = vweird.f32 %v492
    %vm544 = vweird.f32 %v538
    %vm545 = vmor %vm543, %vm544
    %v546 = vsel %vm545, %v538, %v542
    %v547 = vand.u32 2147483647, %v492
    %vm548 = vcmp.eq.f32.partialorder %v547, 8.507059e+37
    %v549 = vand.u32 %v492, 2147483648
    %v550 = vor.u32 1.1754944e-38, %v549
    %v551 = vsel %vm548, %v550, %v546
    %v552 = vmul.f32 1.0, %v551
    %v553 = vrcp.pop %v493
    %v554 = vmul.f32 %v493, %v553
    %v555 = vsub.f32 1.0, %v554
    %v556 = vmul.f32 %v553, %v555
    %v557 = vadd.f32 %v553, %v556
    %vm558 = vweird.f32 %v493
    %vm559 = vweird.f32 %v553
    %vm560 = vmor %vm558, %vm559
    %v561 = vsel %vm560, %v553, %v557
    %v562 = vand.u32 2147483647, %v493
    %vm563 = vcmp.eq.f32.partialorder %v562, 8.507059e+37
    %v564 = vand.u32 %v493, 2147483648
    %v565 = vor.u32 1.1754944e-38, %v564
    %v566 = vsel %vm563, %v565, %v561
    %v567 = vmul.f32 1.0, %v566
    %v568 = vrcp.pop %v494
    %v569 = vmul.f32 %v494, %v568
    %v570 = vsub.f32 1.0, %v569
    %v571 = vmul.f32 %v568, %v570
    %v572 = vadd.f32 %v568, %v571
    %vm573 = vweird.f32 %v494
    %vm574 = vweird.f32 %v568
    %vm575 = vmor %vm573, %vm574
    %v576 = vsel %vm575, %v568, %v572
    %v577 = vand.u32 2147483647, %v494
    %vm578 = vcmp.eq.f32.partialorder %v577, 8.507059e+37
    %v579 = vand.u32 %v494, 2147483648
    %v580 = vor.u32 1.1754944e-38, %v579
    %v581 = vsel %vm578, %v580, %v576
    %v582 = vmul.f32 1.0, %v581
    %v583 = vrcp.pop %v495
    %v584 = vmul.f32 %v495, %v583
    %v585 = vsub.f32 1.0, %v584
    %v586 = vmul.f32 %v583, %v585
    %v587 = vadd.f32 %v583, %v586
    %vm588 = vweird.f32 %v495
    %vm589 = vweird.f32 %v583
    %vm590 = vmor %vm588, %vm589
    %v591 = vsel %vm590, %v583, %v587
    %v592 = vand.u32 2147483647, %v495
    %vm593 = vcmp.eq.f32.partialorder %v592, 8.507059e+37
    %v594 = vand.u32 %v495, 2147483648
    %v595 = vor.u32 1.1754944e-38, %v594
    %v596 = vsel %vm593, %v595, %v591
    %v597 = vmul.f32 1.0, %v596
    %v598 = vrcp.pop %v496
    %v599 = vmul.f32 %v496, %v598
    %v600 = vsub.f32 1.0, %v599
    %v601 = vmul.f32 %v598, %v600
    %v602 = vadd.f32 %v598, %v601
    %vm603 = vweird.f32 %v496
    %vm604 = vweird.f32 %v598
    %vm605 = vmor %vm603, %vm604
    %v606 = vsel %vm605, %v598, %v602
    %v607 = vand.u32 2147483647, %v496
    %vm608 = vcmp.eq.f32.partialorder %v607, 8.507059e+37
    %v609 = vand.u32 %v496, 2147483648
    %v610 = vor.u32 1.1754944e-38, %v609
    %v611 = vsel %vm608, %v610, %v606
    %v612 = vmul.f32 1.0, %v611
    %v613 = vrcp.pop %v497
    %v614 = vmul.f32 %v497, %v613
    %v615 = vsub.f32 1.0, %v614
    %v616 = vmul.f32 %v613, %v615
    %v617 = vadd.f32 %v613, %v616
    %vm618 = vweird.f32 %v497
    %vm619 = vweird.f32 %v613
    %vm620 = vmor %vm618, %vm619
    %v621 = vsel %vm620, %v613, %v617
    %v622 = vand.u32 2147483647, %v497
    %vm623 = vcmp.eq.f32.partialorder %v622, 8.507059e+37
    %v624 = vand.u32 %v497, 2147483648
    %v625 = vor.u32 1.1754944e-38, %v624
    %v626 = vsel %vm623, %v625, %v621
    %v627 = vmul.f32 1.0, %v626
    %v628 = vrcp.pop %v498
    %v629 = vmul.f32 %v498, %v628
    %v630 = vsub.f32 1.0, %v629
    %v631 = vmul.f32 %v628, %v630
    %v632 = vadd.f32 %v628, %v631
    %vm633 = vweird.f32 %v498
    %vm634 = vweird.f32 %v628
    %vm635 = vmor %vm633, %vm634
    %v636 = vsel %vm635, %v628, %v632
    %v637 = vand.u32 2147483647, %v498
    %vm638 = vcmp.eq.f32.partialorder %v637, 8.507059e+37
    %v639 = vand.u32 %v498, 2147483648
    %v640 = vor.u32 1.1754944e-38, %v639
    %v641 = vsel %vm638, %v640, %v636
    %v642 = vmul.f32 1.0, %v641
    %v643 = vrcp.pop %v499
    %v644 = vmul.f32 %v499, %v643
    %v645 = vsub.f32 1.0, %v644
    %v646 = vmul.f32 %v643, %v645
    %v647 = vadd.f32 %v643, %v646
    %vm648 = vweird.f32 %v499
    %vm649 = vweird.f32 %v643
    %vm650 = vmor %vm648, %vm649
    %v651 = vsel %vm650, %v643, %v647
    %v652 = vand.u32 2147483647, %v499
    %vm653 = vcmp.eq.f32.partialorder %v652, 8.507059e+37
    %v654 = vand.u32 %v499, 2147483648
    %v655 = vor.u32 1.1754944e-38, %v654
    %v656 = vsel %vm653, %v655, %v651
    %v657 = vmul.f32 1.0, %v656
    %v658 = vrcp.pop %v500
    %v659 = vmul.f32 %v500, %v658
    %v660 = vsub.f32 1.0, %v659
    %v661 = vmul.f32 %v658, %v660
    %v662 = vadd.f32 %v658, %v661
    %vm663 = vweird.f32 %v500
    %vm664 = vweird.f32 %v658
    %vm665 = vmor %vm663, %vm664
    %v666 = vsel %vm665, %v658, %v662
    %v667 = vand.u32 2147483647, %v500
    %vm668 = vcmp.eq.f32.partialorder %v667, 8.507059e+37
    %v669 = vand.u32 %v500, 2147483648
    %v670 = vor.u32 1.1754944e-38, %v669
    %v671 = vsel %vm668, %v670, %v666
    %v672 = vmul.f32 1.0, %v671
    %v673 = vrcp.pop %v501
    %v674 = vmul.f32 %v501, %v673
    %v675 = vsub.f32 1.0, %v674
    %v676 = vmul.f32 %v673, %v675
    %v677 = vadd.f32 %v673, %v676
    %vm678 = vweird.f32 %v501
    %vm679 = vweird.f32 %v673
    %vm680 = vmor %vm678, %vm679
    %v681 = vsel %vm680, %v673, %v677
    %v682 = vand.u32 2147483647, %v501
    %vm683 = vcmp.eq.f32.partialorder %v682, 8.507059e+37
    %v684 = vand.u32 %v501, 2147483648
    %v685 = vor.u32 1.1754944e-38, %v684
    %v686 = vsel %vm683, %v685, %v681
    %v687 = vmul.f32 1.0, %v686
    %v688 = vrcp.pop %v502
    %v689 = vmul.f32 %v502, %v688
    %v690 = vsub.f32 1.0, %v689
    %v691 = vmul.f32 %v688, %v690
    %v692 = vadd.f32 %v688, %v691
    %vm693 = vweird.f32 %v502
    %vm694 = vweird.f32 %v688
    %vm695 = vmor %vm693, %vm694
    %v696 = vsel %vm695, %v688, %v692
    %v697 = vand.u32 2147483647, %v502
    %vm698 = vcmp.eq.f32.partialorder %v697, 8.507059e+37
    %v699 = vand.u32 %v502, 2147483648
    %v700 = vor.u32 1.1754944e-38, %v699
    %v701 = vsel %vm698, %v700, %v696
    %v702 = vmul.f32 1.0, %v701
    %v703 = vrcp.pop %v503
    %v704 = vmul.f32 %v503, %v703
    %v705 = vsub.f32 1.0, %v704
    %v706 = vmul.f32 %v703, %v705
    %v707 = vadd.f32 %v703, %v706
    %vm708 = vweird.f32 %v503
    %vm709 = vweird.f32 %v703
    %vm710 = vmor %vm708, %vm709
    %v711 = vsel %vm710, %v703, %v707
    %v712 = vand.u32 2147483647, %v503
    %vm713 = vcmp.eq.f32.partialorder %v712, 8.507059e+37
    %v714 = vand.u32 %v503, 2147483648
    %v715 = vor.u32 1.1754944e-38, %v714
    %v716 = vsel %vm713, %v715, %v711
    %v717 = vmul.f32 1.0, %v716
    %v718 = vrcp.pop %v504
    %v719 = vmul.f32 %v504, %v718
    %v720 = vsub.f32 1.0, %v719
    %v721 = vmul.f32 %v718, %v720
    %v722 = vadd.f32 %v718, %v721
    %vm723 = vweird.f32 %v504
    %vm724 = vweird.f32 %v718
    %vm725 = vmor %vm723, %vm724
    %v726 = vsel %vm725, %v718, %v722
    %v727 = vand.u32 2147483647, %v504
    %vm728 = vcmp.eq.f32.partialorder %v727, 8.507059e+37
    %v729 = vand.u32 %v504, 2147483648
    %v730 = vor.u32 1.1754944e-38, %v729
    %v731 = vsel %vm728, %v730, %v726
    %v732 = vmul.f32 1.0, %v731
    %v733 = vrcp.pop %v505
    %v734 = vmul.f32 %v505, %v733
    %v735 = vsub.f32 1.0, %v734
    %v736 = vmul.f32 %v733, %v735
    %v737 = vadd.f32 %v733, %v736
    %vm738 = vweird.f32 %v505
    %vm739 = vweird.f32 %v733
    %vm740 = vmor %vm738, %vm739
    %v741 = vsel %vm740, %v733, %v737
    %v742 = vand.u32 2147483647, %v505
    %vm743 = vcmp.eq.f32.partialorder %v742, 8.507059e+37
    %v744 = vand.u32 %v505, 2147483648
    %v745 = vor.u32 1.1754944e-38, %v744
    %v746 = vsel %vm743, %v745, %v741
    %v747 = vmul.f32 1.0, %v746
    %v748 = vrcp.pop %v506
    %v749 = vmul.f32 %v506, %v748
    %v750 = vsub.f32 1.0, %v749
    %v751 = vmul.f32 %v748, %v750
    %v752 = vadd.f32 %v748, %v751
    %vm753 = vweird.f32 %v506
    %vm754 = vweird.f32 %v748
    %vm755 = vmor %vm753, %vm754
    %v756 = vsel %vm755, %v748, %v752
    %v757 = vand.u32 2147483647, %v506
    %vm758 = vcmp.eq.f32.partialorder %v757, 8.507059e+37
    %v759 = vand.u32 %v506, 2147483648
    %v760 = vor.u32 1.1754944e-38, %v759
    %v761 = vsel %vm758, %v760, %v756
    %v762 = vmul.f32 1.0, %v761
    %v763 = vrcp.pop %v507
    %v764 = vmul.f32 %v507, %v763
    %v765 = vsub.f32 1.0, %v764
    %v766 = vmul.f32 %v763, %v765
    %v767 = vadd.f32 %v763, %v766
    %vm768 = vweird.f32 %v507
    %vm769 = vweird.f32 %v763
    %vm770 = vmor %vm768, %vm769
    %v771 = vsel %vm770, %v763, %v767
    %v772 = vand.u32 2147483647, %v507
    %vm773 = vcmp.eq.f32.partialorder %v772, 8.507059e+37
    %v774 = vand.u32 %v507, 2147483648
    %v775 = vor.u32 1.1754944e-38, %v774
    %v776 = vsel %vm773, %v775, %v771
    %v777 = vmul.f32 1.0, %v776
    %v778 = vrcp.pop %v508
    %v779 = vmul.f32 %v508, %v778
    %v780 = vsub.f32 1.0, %v779
    %v781 = vmul.f32 %v778, %v780
    %v782 = vadd.f32 %v778, %v781
    %vm783 = vweird.f32 %v508
    %vm784 = vweird.f32 %v778
    %vm785 = vmor %vm783, %vm784
    %v786 = vsel %vm785, %v778, %v782
    %v787 = vand.u32 2147483647, %v508
    %vm788 = vcmp.eq.f32.partialorder %v787, 8.507059e+37
    %v789 = vand.u32 %v508, 2147483648
    %v790 = vor.u32 1.1754944e-38, %v789
    %v791 = vsel %vm788, %v790, %v786
    %v792 = vmul.f32 1.0, %v791
    %v793 = vrcp.pop %v509
    %v794 = vmul.f32 %v509, %v793
    %v795 = vsub.f32 1.0, %v794
    %v796 = vmul.f32 %v793, %v795
    %v797 = vadd.f32 %v793, %v796
    %vm798 = vweird.f32 %v509
    %vm799 = vweird.f32 %v793
    %vm800 = vmor %vm798, %vm799
    %v801 = vsel %vm800, %v793, %v797
    %v802 = vand.u32 2147483647, %v509
    %vm803 = vcmp.eq.f32.partialorder %v802, 8.507059e+37
    %v804 = vand.u32 %v509, 2147483648
    %v805 = vor.u32 1.1754944e-38, %v804
    %v806 = vsel %vm803, %v805, %v801
    %v807 = vmul.f32 1.0, %v806
    %v808 = vrcp.pop %v510
    %v809 = vmul.f32 %v510, %v808
    %v810 = vsub.f32 1.0, %v809
    %v811 = vmul.f32 %v808, %v810
    %v812 = vadd.f32 %v808, %v811
    %vm813 = vweird.f32 %v510
    %vm814 = vweird.f32 %v808
    %vm815 = vmor %vm813, %vm814
    %v816 = vsel %vm815, %v808, %v812
    %v817 = vand.u32 2147483647, %v510
    %vm818 = vcmp.eq.f32.partialorder %v817, 8.507059e+37
    %v819 = vand.u32 %v510, 2147483648
    %v820 = vor.u32 1.1754944e-38, %v819
    %v821 = vsel %vm818, %v820, %v816
    %v822 = vmul.f32 1.0, %v821
    %v823 = vrcp.pop %v511
    %v824 = vmul.f32 %v511, %v823
    %v825 = vsub.f32 1.0, %v824
    %v826 = vmul.f32 %v823, %v825
    %v827 = vadd.f32 %v823, %v826
    %vm828 = vweird.f32 %v511
    %vm829 = vweird.f32 %v823
    %vm830 = vmor %vm828, %vm829
    %v831 = vsel %vm830, %v823, %v827
    %v832 = vand.u32 2147483647, %v511
    %vm833 = vcmp.eq.f32.partialorder %v832, 8.507059e+37
    %v834 = vand.u32 %v511, 2147483648
    %v835 = vor.u32 1.1754944e-38, %v834
    %v836 = vsel %vm833, %v835, %v831
    %v837 = vmul.f32 1.0, %v836
    %v838 = vrcp.pop %v512
    %v839 = vmul.f32 %v512, %v838
    %v840 = vsub.f32 1.0, %v839
    %v841 = vmul.f32 %v838, %v840
    %v842 = vadd.f32 %v838, %v841
    %vm843 = vweird.f32 %v512
    %vm844 = vweird.f32 %v838
    %vm845 = vmor %vm843, %vm844
    %v846 = vsel %vm845, %v838, %v842
    %v847 = vand.u32 2147483647, %v512
    %vm848 = vcmp.eq.f32.partialorder %v847, 8.507059e+37
    %v849 = vand.u32 %v512, 2147483648
    %v850 = vor.u32 1.1754944e-38, %v849
    %v851 = vsel %vm848, %v850, %v846
    %v852 = vmul.f32 1.0, %v851
    %v853 = vrcp.pop %v513
    %v854 = vmul.f32 %v513, %v853
    %v855 = vsub.f32 1.0, %v854
    %v856 = vmul.f32 %v853, %v855
    %v857 = vadd.f32 %v853, %v856
    %vm858 = vweird.f32 %v513
    %vm859 = vweird.f32 %v853
    %vm860 = vmor %vm858, %vm859
    %v861 = vsel %vm860, %v853, %v857
    %v862 = vand.u32 2147483647, %v513
    %vm863 = vcmp.eq.f32.partialorder %v862, 8.507059e+37
    %v864 = vand.u32 %v513, 2147483648
    %v865 = vor.u32 1.1754944e-38, %v864
    %v866 = vsel %vm863, %v865, %v861
    %v867 = vmul.f32 1.0, %v866
    %v868 = vrcp.pop %v514
    %v869 = vmul.f32 %v514, %v868
    %v870 = vsub.f32 1.0, %v869
    %v871 = vmul.f32 %v868, %v870
    %v872 = vadd.f32 %v868, %v871
    %vm873 = vweird.f32 %v514
    %vm874 = vweird.f32 %v868
    %vm875 = vmor %vm873, %vm874
    %v876 = vsel %vm875, %v868, %v872
    %v877 = vand.u32 2147483647, %v514
    %vm878 = vcmp.eq.f32.partialorder %v877, 8.507059e+37
    %v879 = vand.u32 %v514, 2147483648
    %v880 = vor.u32 1.1754944e-38, %v879
    %v881 = vsel %vm878, %v880, %v876
    %v882 = vmul.f32 1.0, %v881
    %v883 = vrcp.pop %v515
    %v884 = vmul.f32 %v515, %v883
    %v885 = vsub.f32 1.0, %v884
    %v886 = vmul.f32 %v883, %v885
    %v887 = vadd.f32 %v883, %v886
    %vm888 = vweird.f32 %v515
    %vm889 = vweird.f32 %v883
    %vm890 = vmor %vm888, %vm889
    %v891 = vsel %vm890, %v883, %v887
    %v892 = vand.u32 2147483647, %v515
    %vm893 = vcmp.eq.f32.partialorder %v892, 8.507059e+37
    %v894 = vand.u32 %v515, 2147483648
    %v895 = vor.u32 1.1754944e-38, %v894
    %v896 = vsel %vm893, %v895, %v891
    %v897 = vmul.f32 1.0, %v896
    %v898 = vrcp.pop %v516
    %v899 = vmul.f32 %v516, %v898
    %v900 = vsub.f32 1.0, %v899
    %v901 = vmul.f32 %v898, %v900
    %v902 = vadd.f32 %v898, %v901
    %vm903 = vweird.f32 %v516
    %vm904 = vweird.f32 %v898
    %vm905 = vmor %vm903, %vm904
    %v906 = vsel %vm905, %v898, %v902
    %v907 = vand.u32 2147483647, %v516
    %vm908 = vcmp.eq.f32.partialorder %v907, 8.507059e+37
    %v909 = vand.u32 %v516, 2147483648
    %v910 = vor.u32 1.1754944e-38, %v909
    %v911 = vsel %vm908, %v910, %v906
    %v912 = vmul.f32 1.0, %v911
    %v913 = vrcp.pop %v517
    %v914 = vmul.f32 %v517, %v913
    %v915 = vsub.f32 1.0, %v914
    %v916 = vmul.f32 %v913, %v915
    %v917 = vadd.f32 %v913, %v916
    %vm918 = vweird.f32 %v517
    %vm919 = vweird.f32 %v913
    %vm920 = vmor %vm918, %vm919
    %v921 = vsel %vm920, %v913, %v917
    %v922 = vand.u32 2147483647, %v517
    %vm923 = vcmp.eq.f32.partialorder %v922, 8.507059e+37
    %v924 = vand.u32 %v517, 2147483648
    %v925 = vor.u32 1.1754944e-38, %v924
    %v926 = vsel %vm923, %v925, %v921
    %v927 = vmul.f32 1.0, %v926
    %v928 = vrcp.pop %v518
    %v929 = vmul.f32 %v518, %v928
    %v930 = vsub.f32 1.0, %v929
    %v931 = vmul.f32 %v928, %v930
    %v932 = vadd.f32 %v928, %v931
    %vm933 = vweird.f32 %v518
    %vm934 = vweird.f32 %v928
    %vm935 = vmor %vm933, %vm934
    %v936 = vsel %vm935, %v928, %v932
    %v937 = vand.u32 2147483647, %v518
    %vm938 = vcmp.eq.f32.partialorder %v937, 8.507059e+37
    %v939 = vand.u32 %v518, 2147483648
    %v940 = vor.u32 1.1754944e-38, %v939
    %v941 = vsel %vm938, %v940, %v936
    %v942 = vmul.f32 1.0, %v941
    %v943 = vrcp.pop %v519
    %v944 = vmul.f32 %v519, %v943
    %v945 = vsub.f32 1.0, %v944
    %v946 = vmul.f32 %v943, %v945
    %v947 = vadd.f32 %v943, %v946
    %vm948 = vweird.f32 %v519
    %vm949 = vweird.f32 %v943
    %vm950 = vmor %vm948, %vm949
    %v951 = vsel %vm950, %v943, %v947
    %v952 = vand.u32 2147483647, %v519
    %vm953 = vcmp.eq.f32.partialorder %v952, 8.507059e+37
    %v954 = vand.u32 %v519, 2147483648
    %v955 = vor.u32 1.1754944e-38, %v954
    %v956 = vsel %vm953, %v955, %v951
    %v957 = vmul.f32 1.0, %v956
    %v958 = vrcp.pop %v520
    %v959 = vmul.f32 %v520, %v958
    %v960 = vsub.f32 1.0, %v959
    %v961 = vmul.f32 %v958, %v960
    %v962 = vadd.f32 %v958, %v961
    %vm963 = vweird.f32 %v520
    %vm964 = vweird.f32 %v958
    %vm965 = vmor %vm963, %vm964
    %v966 = vsel %vm965, %v958, %v962
    %v967 = vand.u32 2147483647, %v520
    %vm968 = vcmp.eq.f32.partialorder %v967, 8.507059e+37
    %v969 = vand.u32 %v520, 2147483648
    %v970 = vor.u32 1.1754944e-38, %v969
    %v971 = vsel %vm968, %v970, %v966
    %v972 = vmul.f32 1.0, %v971
    %v973 = vrcp.pop %v521
    %v974 = vmul.f32 %v521, %v973
    %v975 = vsub.f32 1.0, %v974
    %v976 = vmul.f32 %v973, %v975
    %v977 = vadd.f32 %v973, %v976
    %vm978 = vweird.f32 %v521
    %vm979 = vweird.f32 %v973
    %vm980 = vmor %vm978, %vm979
    %v981 = vsel %vm980, %v973, %v977
    %v982 = vand.u32 2147483647, %v521
    %vm983 = vcmp.eq.f32.partialorder %v982, 8.507059e+37
    %v984 = vand.u32 %v521, 2147483648
    %v985 = vor.u32 1.1754944e-38, %v984
    %v986 = vsel %vm983, %v985, %v981
    %v987 = vmul.f32 1.0, %v986
    %v988 = vrcp.pop %v522
    %v989 = vmul.f32 %v522, %v988
    %v990 = vsub.f32 1.0, %v989
    %v991 = vmul.f32 %v988, %v990
    %v992 = vadd.f32 %v988, %v991
    %vm993 = vweird.f32 %v522
    %vm994 = vweird.f32 %v988
    %vm995 = vmor %vm993, %vm994
    %v996 = vsel %vm995, %v988, %v992
    %v997 = vand.u32 2147483647, %v522
    %vm998 = vcmp.eq.f32.partialorder %v997, 8.507059e+37
    %v999 = vand.u32 %v522, 2147483648
    %v1000 = vor.u32 1.1754944e-38, %v999
    %v1001 = vsel %vm998, %v1000, %v996
    %v1002 = vmul.f32 1.0, %v1001
    %v1003 = vmul.f32 %v363, %v537
    %v1004 = vmul.f32 %v364, %v552
    %v1005 = vmul.f32 %v365, %v567
    %v1006 = vmul.f32 %v366, %v582
    %v1007 = vmul.f32 %v367, %v597
    %v1008 = vmul.f32 %v368, %v612
    %v1009 = vmul.f32 %v369, %v627
    %v1010 = vmul.f32 %v370, %v642
    %v1011 = vmul.f32 %v371, %v657
    %v1012 = vmul.f32 %v372, %v672
    %v1013 = vmul.f32 %v373, %v687
    %v1014 = vmul.f32 %v374, %v702
    %v1015 = vmul.f32 %v375, %v717
    %v1016 = vmul.f32 %v376, %v732
    %v1017 = vmul.f32 %v377, %v747
    %v1018 = vmul.f32 %v378, %v762
    %v1019 = vmul.f32 %v379, %v777
    %v1020 = vmul.f32 %v380, %v792
    %v1021 = vmul.f32 %v381, %v807
    %v1022 = vmul.f32 %v382, %v822
    %v1023 = vmul.f32 %v383, %v837
    %v1024 = vmul.f32 %v384, %v852
    %v1025 = vmul.f32 %v385, %v867
    %v1026 = vmul.f32 %v386, %v882
    %v1027 = vmul.f32 %v387, %v897
    %v1028 = vmul.f32 %v388, %v912
    %v1029 = vmul.f32 %v389, %v927
    %v1030 = vmul.f32 %v390, %v942
    %v1031 = vmul.f32 %v391, %v957
    %v1032 = vmul.f32 %v392, %v972
    %v1033 = vmul.f32 %v393, %v987
    %v1034 = vmul.f32 %v394, %v1002
    %v1035 = vld [vmem:[#allocation2] sm:$0x1]
    %vm1036 = vcmask 7168
    %v1037 = vsel %vm1036, %v1003, -inf
    %v1038 = vsel %vm1036, %v1004, -inf
    %v1039 = vsel %vm1036, %v1005, -inf
    %v1040 = vsel %vm1036, %v1006, -inf
    %v1041 = vsel %vm1036, %v1007, -inf
    %v1042 = vmax.f32 %v1037, %v1041
    %v1043 = vsel %vm1036, %v1008, -inf
    %v1044 = vmax.f32 %v1038, %v1043
    %v1045 = vsel %vm1036, %v1009, -inf
    %v1046 = vmax.f32 %v1039, %v1045
    %v1047 = vsel %vm1036, %v1010, -inf
    %v1048 = vmax.f32 %v1040, %v1047
    %v1049 = vsel %vm1036, %v1011, -inf
    %v1050 = vmax.f32 %v1042, %v1049
    %v1051 = vsel %vm1036, %v1012, -inf
    %v1052 = vmax.f32 %v1044, %v1051
    %v1053 = vsel %vm1036, %v1013, -inf
    %v1054 = vmax.f32 %v1046, %v1053
    %v1055 = vsel %vm1036, %v1014, -inf
    %v1056 = vmax.f32 %v1048, %v1055
    %v1057 = vsel %vm1036, %v1015, -inf
    %v1058 = vmax.f32 %v1050, %v1057
    %v1059 = vsel %vm1036, %v1016, -inf
    %v1060 = vmax.f32 %v1052, %v1059
    %v1061 = vsel %vm1036, %v1017, -inf
    %v1062 = vmax.f32 %v1054, %v1061
    %v1063 = vsel %vm1036, %v1018, -inf
    %v1064 = vmax.f32 %v1056, %v1063
    %v1065 = vsel %vm1036, %v1019, -inf
    %v1066 = vmax.f32 %v1058, %v1065
    %v1067 = vsel %vm1036, %v1020, -inf
    %v1068 = vmax.f32 %v1060, %v1067
    %v1069 = vsel %vm1036, %v1021, -inf
    %v1070 = vmax.f32 %v1062, %v1069
    %v1071 = vsel %vm1036, %v1022, -inf
    %v1072 = vmax.f32 %v1064, %v1071
    %v1073 = vsel %vm1036, %v1023, -inf
    %v1074 = vmax.f32 %v1066, %v1073
    %v1075 = vsel %vm1036, %v1024, -inf
    %v1076 = vmax.f32 %v1068, %v1075
    %v1077 = vsel %vm1036, %v1025, -inf
    %v1078 = vmax.f32 %v1070, %v1077
    %v1079 = vsel %vm1036, %v1026, -inf
    %v1080 = vmax.f32 %v1072, %v1079
    %v1081 = vsel %vm1036, %v1027, -inf
    %v1082 = vmax.f32 %v1074, %v1081
    %v1083 = vsel %vm1036, %v1028, -inf
    %v1084 = vmax.f32 %v1076, %v1083
    %v1085 = vsel %vm1036, %v1029, -inf
    %v1086 = vmax.f32 %v1078, %v1085
    %v1087 = vsel %vm1036, %v1030, -inf
    %v1088 = vmax.f32 %v1080, %v1087
    %v1089 = vsel %vm1036, %v1031, -inf
    %v1090 = vmax.f32 %v1082, %v1089
    %v1091 = vsel %vm1036, %v1032, -inf
    %v1092 = vmax.f32 %v1084, %v1091
    %v1093 = vsel %vm1036, %v1033, -inf
    %v1094 = vmax.f32 %v1086, %v1093
    %v1095 = vsel %vm1036, %v1034, -inf
    %v1096 = vmax.f32 %v1088, %v1095
    %v1097 = vmax.f32 %v1090, %v1092
    %v1098 = vmax.f32 %v1094, %v1096
    %v1099 = vmax.f32 %v1097, %v1098
    %v1100 = vrot.slane %v1099, 4
    %v1101 = vmax.f32 %v1099, %v1100
    %v1102 = vrot.slane %v1101, 2
    %v1103 = vmax.f32 %v1101, %v1102
    %v1104 = vrot.slane %v1103, 1
    %v1105 = vmax.f32 %v1103, %v1104
    %v1106 = vmax.f32 %v1035, %v1105
    %v1107 = vsub.f32 %v1035, %v1106
    %v1108 = vmul.f32 %v1107, 1.442695
    %v1109 = vpow.pop %v1108
    %v1111 = vperm.slane %v1106, 0
    %v1113 = vsub.f32 %v1003, %v1111
    %v1114 = vsub.f32 %v1004, %v1111
    %v1115 = vsub.f32 %v1005, %v1111
    %v1116 = vsub.f32 %v1006, %v1111
    %v1117 = vsub.f32 %v1007, %v1111
    %v1118 = vsub.f32 %v1008, %v1111
    %v1119 = vsub.f32 %v1009, %v1111
    %v1120 = vsub.f32 %v1010, %v1111
    %v1121 = vsub.f32 %v1011, %v1111
    %v1122 = vsub.f32 %v1012, %v1111
    %v1123 = vsub.f32 %v1013, %v1111
    %v1124 = vsub.f32 %v1014, %v1111
    %v1125 = vsub.f32 %v1015, %v1111
    %v1126 = vsub.f32 %v1016, %v1111
    %v1127 = vsub.f32 %v1017, %v1111
    %v1128 = vsub.f32 %v1018, %v1111
    %v1129 = vsub.f32 %v1019, %v1111
    %v1130 = vsub.f32 %v1020, %v1111
    %v1131 = vsub.f32 %v1021, %v1111
    %v1132 = vsub.f32 %v1022, %v1111
    %v1133 = vsub.f32 %v1023, %v1111
    %v1134 = vsub.f32 %v1024, %v1111
    %v1135 = vsub.f32 %v1025, %v1111
    %v1136 = vsub.f32 %v1026, %v1111
    %v1137 = vsub.f32 %v1027, %v1111
    %v1138 = vsub.f32 %v1028, %v1111
    %v1139 = vsub.f32 %v1029, %v1111
    %v1140 = vsub.f32 %v1030, %v1111
    %v1141 = vsub.f32 %v1031, %v1111
    %v1142 = vsub.f32 %v1032, %v1111
    %v1143 = vsub.f32 %v1033, %v1111
    %v1144 = vsub.f32 %v1034, %v1111
    %v1145 = vmul.f32 %v1113, 1.442695
    %v1146 = vpow.pop %v1145
    %v1147 = vmul.f32 %v1114, 1.442695
    %v1148 = vpow.pop %v1147
    %v1149 = vmul.f32 %v1115, 1.442695
    %v1150 = vpow.pop %v1149
    %v1151 = vmul.f32 %v1116, 1.442695
    %v1152 = vpow.pop %v1151
    %v1153 = vmul.f32 %v1117, 1.442695
    %v1154 = vpow.pop %v1153
    %v1155 = vmul.f32 %v1118, 1.442695
    %v1156 = vpow.pop %v1155
    %v1157 = vmul.f32 %v1119, 1.442695
    %v1158 = vpow.pop %v1157
    %v1159 = vmul.f32 %v1120, 1.442695
    %v1160 = vpow.pop %v1159
    %v1161 = vmul.f32 %v1121, 1.442695
    %v1162 = vpow.pop %v1161
    %v1163 = vmul.f32 %v1122, 1.442695
    %v1164 = vpow.pop %v1163
    %v1165 = vmul.f32 %v1123, 1.442695
    %v1166 = vpow.pop %v1165
    %v1167 = vmul.f32 %v1124, 1.442695
    %v1168 = vpow.pop %v1167
    %v1169 = vmul.f32 %v1125, 1.442695
    %v1170 = vpow.pop %v1169
    %v1171 = vmul.f32 %v1126, 1.442695
    %v1172 = vpow.pop %v1171
    %v1173 = vmul.f32 %v1127, 1.442695
    %v1174 = vpow.pop %v1173
    %v1175 = vmul.f32 %v1128, 1.442695
    %v1176 = vpow.pop %v1175
    %v1177 = vmul.f32 %v1129, 1.442695
    %v1178 = vpow.pop %v1177
    %v1179 = vmul.f32 %v1130, 1.442695
    %v1180 = vpow.pop %v1179
    %v1181 = vmul.f32 %v1131, 1.442695
    %v1182 = vpow.pop %v1181
    %v1183 = vmul.f32 %v1132, 1.442695
    %v1184 = vpow.pop %v1183
    %v1185 = vmul.f32 %v1133, 1.442695
    %v1186 = vpow.pop %v1185
    %v1187 = vmul.f32 %v1134, 1.442695
    %v1188 = vpow.pop %v1187
    %v1189 = vmul.f32 %v1135, 1.442695
    %v1190 = vpow.pop %v1189
    %v1191 = vmul.f32 %v1136, 1.442695
    %v1192 = vpow.pop %v1191
    %v1193 = vmul.f32 %v1137, 1.442695
    %v1194 = vpow.pop %v1193
    %v1195 = vmul.f32 %v1138, 1.442695
    %v1196 = vpow.pop %v1195
    %v1197 = vmul.f32 %v1139, 1.442695
    %v1198 = vpow.pop %v1197
    %v1199 = vmul.f32 %v1140, 1.442695
    %v1200 = vpow.pop %v1199
    %v1201 = vmul.f32 %v1141, 1.442695
    %v1202 = vpow.pop %v1201
    %v1203 = vmul.f32 %v1142, 1.442695
    %v1204 = vpow.pop %v1203
    %v1205 = vmul.f32 %v1143, 1.442695
    %v1206 = vpow.pop %v1205
    %v1207 = vmul.f32 %v1144, 1.442695
    %v1208 = vpow.pop %v1207
    %v1209 = vld [vmem:[#allocation3] sm:$0x1]
    %v1210 = vmul.f32 %v1109, %v1209
    %v1211 = vsel %vm1036, %v1146, 0.0
    %v1212 = vsel %vm1036, %v1148, 0.0
    %v1213 = vadd.f32 %v1211, %v1212
    %v1214 = vsel %vm1036, %v1150, 0.0
    %v1215 = vadd.f32 %v1213, %v1214
    %v1216 = vsel %vm1036, %v1152, 0.0
    %v1217 = vadd.f32 %v1215, %v1216
    %v1218 = vsel %vm1036, %v1154, 0.0
    %v1219 = vadd.f32 %v1217, %v1218
    %v1220 = vsel %vm1036, %v1156, 0.0
    %v1221 = vadd.f32 %v1219, %v1220
    %v1222 = vsel %vm1036, %v1158, 0.0
    %v1223 = vadd.f32 %v1221, %v1222
    %v1224 = vsel %vm1036, %v1160, 0.0
    %v1225 = vadd.f32 %v1223, %v1224
    %v1226 = vsel %vm1036, %v1162, 0.0
    %v1227 = vadd.f32 %v1225, %v1226
    %v1228 = vsel %vm1036, %v1164, 0.0
    %v1229 = vadd.f32 %v1227, %v1228
    %v1230 = vsel %vm1036, %v1166, 0.0
    %v1231 = vadd.f32 %v1229, %v1230
    %v1232 = vsel %vm1036, %v1168, 0.0
    %v1233 = vadd.f32 %v1231, %v1232
    %v1234 = vsel %vm1036, %v1170, 0.0
    %v1235 = vadd.f32 %v1233, %v1234
    %v1236 = vsel %vm1036, %v1172, 0.0
    %v1237 = vadd.f32 %v1235, %v1236
    %v1238 = vsel %vm1036, %v1174, 0.0
    %v1239 = vadd.f32 %v1237, %v1238
    %v1240 = vsel %vm1036, %v1176, 0.0
    %v1241 = vadd.f32 %v1239, %v1240
    %v1242 = vsel %vm1036, %v1178, 0.0
    %v1243 = vadd.f32 %v1241, %v1242
    %v1244 = vsel %vm1036, %v1180, 0.0
    %v1245 = vadd.f32 %v1243, %v1244
    %v1246 = vsel %vm1036, %v1182, 0.0
    %v1247 = vadd.f32 %v1245, %v1246
    %v1248 = vsel %vm1036, %v1184, 0.0
    %v1249 = vadd.f32 %v1247, %v1248
    %v1250 = vsel %vm1036, %v1186, 0.0
    %v1251 = vadd.f32 %v1249, %v1250
    %v1252 = vsel %vm1036, %v1188, 0.0
    %v1253 = vadd.f32 %v1251, %v1252
    %v1254 = vsel %vm1036, %v1190, 0.0
    %v1255 = vadd.f32 %v1253, %v1254
    %v1256 = vsel %vm1036, %v1192, 0.0
    %v1257 = vadd.f32 %v1255, %v1256
    %v1258 = vsel %vm1036, %v1194, 0.0
    %v1259 = vadd.f32 %v1257, %v1258
    %v1260 = vsel %vm1036, %v1196, 0.0
    %v1261 = vadd.f32 %v1259, %v1260
    %v1262 = vsel %vm1036, %v1198, 0.0
    %v1263 = vadd.f32 %v1261, %v1262
    %v1264 = vsel %vm1036, %v1200, 0.0
    %v1265 = vadd.f32 %v1263, %v1264
    %v1266 = vsel %vm1036, %v1202, 0.0
    %v1267 = vadd.f32 %v1265, %v1266
    %v1268 = vsel %vm1036, %v1204, 0.0
    %v1269 = vadd.f32 %v1267, %v1268
    %v1270 = vsel %vm1036, %v1206, 0.0
    %v1271 = vadd.f32 %v1269, %v1270
    %v1272 = vsel %vm1036, %v1208, 0.0
    %v1273 = vadd.f32 %v1271, %v1272
    %v1274 = vrot.slane %v1273, 4
    %v1275 = vadd.f32 %v1273, %v1274
    %v1276 = vrot.slane %v1275, 2
    %v1277 = vadd.f32 %v1275, %v1276
    %v1278 = vrot.slane %v1277, 1
    %v1279 = vadd.f32 %v1277, %v1278
    %v1280 = vadd.f32 %v1210, %v1279
    %vm1281 = vcmask 0
    %1282 = vst.msk [vmem:[#allocation3] sm:$0x1] %vm1281, %v1280
    %1283 = vxpose.xlu0.b32.start [1/16] %v1146, 128
    %1284 = vxpose.xlu0.b32.cont [2/16] %v1148, 128
    %1285 = vxpose.xlu0.b32.cont [3/16] %v1150, 128
    %1286 = vxpose.xlu0.b32.cont [4/16] %v1152, 128
    %1287 = vxpose.xlu0.b32.cont [5/16] %v1154, 128
    %1288 = vxpose.xlu0.b32.cont [6/16] %v1156, 128
    %1289 = vxpose.xlu0.b32.cont [7/16] %v1158, 128
    %1290 = vxpose.xlu0.b32.cont [8/16] %v1160, 128
    %1291 = vxpose.xlu0.b32.cont [9/16] %v1162, 128
    %1292 = vxpose.xlu0.b32.cont [10/16] %v1164, 128
    %1293 = vxpose.xlu0.b32.cont [11/16] %v1166, 128
    %1294 = vxpose.xlu0.b32.cont [12/16] %v1168, 128
    %1295 = vxpose.xlu0.b32.cont [13/16] %v1170, 128
    %1296 = vxpose.xlu0.b32.cont [14/16] %v1172, 128
    %1297 = vxpose.xlu0.b32.cont [15/16] %v1174, 128
    %1298 = vxpose.xlu0.b32.end [16/16] %v1176, 128
    %v1299 = vpop.trf.xlu0
    %v1300 = vpop.trf.xlu0
    %v1301 = vpop.trf.xlu0
    %v1302 = vpop.trf.xlu0
    %v1303 = vpop.trf.xlu0
    %v1304 = vpop.trf.xlu0
    %v1305 = vpop.trf.xlu0
    %v1306 = vpop.trf.xlu0
    %v1307 = vpop.trf.xlu0
    %v1308 = vpop.trf.xlu0
    %v1309 = vpop.trf.xlu0
    %v1310 = vpop.trf.xlu0
    %v1311 = vpop.trf.xlu0
    %v1312 = vpop.trf.xlu0
    %v1313 = vpop.trf.xlu0
    %v1314 = vpop.trf.xlu0
    %1315 = vxpose.xlu0.b32.start [1/16] %v1178, 128
    %1316 = vxpose.xlu0.b32.cont [2/16] %v1180, 128
    %1317 = vxpose.xlu0.b32.cont [3/16] %v1182, 128
    %1318 = vxpose.xlu0.b32.cont [4/16] %v1184, 128
    %1319 = vxpose.xlu0.b32.cont [5/16] %v1186, 128
    %1320 = vxpose.xlu0.b32.cont [6/16] %v1188, 128
    %1321 = vxpose.xlu0.b32.cont [7/16] %v1190, 128
    %1322 = vxpose.xlu0.b32.cont [8/16] %v1192, 128
    %1323 = vxpose.xlu0.b32.cont [9/16] %v1194, 128
    %1324 = vxpose.xlu0.b32.cont [10/16] %v1196, 128
    %1325 = vxpose.xlu0.b32.cont [11/16] %v1198, 128
    %1326 = vxpose.xlu0.b32.cont [12/16] %v1200, 128
    %1327 = vxpose.xlu0.b32.cont [13/16] %v1202, 128
    %1328 = vxpose.xlu0.b32.cont [14/16] %v1204, 128
    %1329 = vxpose.xlu0.b32.cont [15/16] %v1206, 128
    %1330 = vxpose.xlu0.b32.end [16/16] %v1208, 128
    %v1331 = vpop.trf.xlu0
    %v1332 = vpop.trf.xlu0
    %v1333 = vpop.trf.xlu0
    %v1334 = vpop.trf.xlu0
    %v1335 = vpop.trf.xlu0
    %v1336 = vpop.trf.xlu0
    %v1337 = vpop.trf.xlu0
    %v1338 = vpop.trf.xlu0
    %v1339 = vpop.trf.xlu0
    %v1340 = vpop.trf.xlu0
    %v1341 = vpop.trf.xlu0
    %v1342 = vpop.trf.xlu0
    %v1343 = vpop.trf.xlu0
    %v1344 = vpop.trf.xlu0
    %v1345 = vpop.trf.xlu0
    %v1346 = vpop.trf.xlu0
    %1347 = vmatpush.msra.mxu0 %v74
    %1348 = vmatpush.msra.mxu0 %v73
    %1349 = vmatpush.msra.mxu0 %v72
    %1350 = vmatpush.msra.mxu0 %v71
    %1351 = vmatpush.msra.mxu0 %v70
    %1352 = vmatpush.msra.mxu0 %v69
    %1353 = vmatpush.msra.mxu0 %v68
    %1354 = vmatpush.msra.mxu0 %v67
    %1355 = vmatpush.msra.mxu0 %v66
    %1356 = vmatpush.msra.mxu0 %v65
    %1357 = vmatpush.msra.mxu0 %v64
    %1358 = vmatpush.msra.mxu0 %v63
    %1359 = vmatpush.msra.mxu0 %v62
    %1360 = vmatpush.msra.mxu0 %v61
    %1361 = vmatpush.msra.mxu0 %v60
    %1362 = vmatpush.msra.mxu0 %v59
    %1363 = vmatmul.f32.gmra.mxu0 %v1299
    %v1364 = vpop.f32.mrf.mxu0
    %v1365 = vadd.f32 0.0, %v1364
    %1366 = vdwg.mxu0
    %1367 = vmatpush.msra.mxu0 %v90
    %1368 = vmatpush.msra.mxu0 %v89
    %1369 = vmatpush.msra.mxu0 %v88
    %1370 = vmatpush.msra.mxu0 %v87
    %1371 = vmatpush.msra.mxu0 %v86
    %1372 = vmatpush.msra.mxu0 %v85
    %1373 = vmatpush.msra.mxu0 %v84
    %1374 = vmatpush.msra.mxu0 %v83
    %1375 = vmatpush.msra.mxu0 %v82
    %1376 = vmatpush.msra.mxu0 %v81
    %1377 = vmatpush.msra.mxu0 %v80
    %1378 = vmatpush.msra.mxu0 %v79
    %1379 = vmatpush.msra.mxu0 %v78
    %1380 = vmatpush.msra.mxu0 %v77
    %1381 = vmatpush.msra.mxu0 %v76
    %1382 = vmatpush.msra.mxu0 %v75
    %1383 = vmatmul.f32.gmra.mxu0 %v1331
    %v1384 = vpop.f32.mrf.mxu0
    %v1385 = vadd.f32 %v1365, %v1384
    %1386 = vdwg.mxu0
    %1387 = vxpose.xlu0.b32.start [1/16] %v1109, 128
    %1388 = vxpose.xlu0.b32.cont [2/16] 0.0, 128
    %1389 = vxpose.xlu0.b32.cont [3/16] 0.0, 128
    %1390 = vxpose.xlu0.b32.cont [4/16] 0.0, 128
    %1391 = vxpose.xlu0.b32.cont [5/16] 0.0, 128
    %1392 = vxpose.xlu0.b32.cont [6/16] 0.0, 128
    %1393 = vxpose.xlu0.b32.cont [7/16] 0.0, 128
    %1394 = vxpose.xlu0.b32.cont [8/16] 0.0, 128
    %1395 = vxpose.xlu0.b32.cont [9/16] 0.0, 128
    %1396 = vxpose.xlu0.b32.cont [10/16] 0.0, 128
    %1397 = vxpose.xlu0.b32.cont [11/16] 0.0, 128
    %1398 = vxpose.xlu0.b32.cont [12/16] 0.0, 128
    %1399 = vxpose.xlu0.b32.cont [13/16] 0.0, 128
    %1400 = vxpose.xlu0.b32.cont [14/16] 0.0, 128
    %1401 = vxpose.xlu0.b32.cont [15/16] 0.0, 128
    %1402 = vxpose.xlu0.b32.end [16/16] 0.0, 128
    %v1403 = vpop.trf.xlu0
    %v1404 = vpop.trf.xlu0
    %v1405 = vpop.trf.xlu0
    %v1406 = vpop.trf.xlu0
    %v1407 = vpop.trf.xlu0
    %v1408 = vpop.trf.xlu0
    %v1409 = vpop.trf.xlu0
    %v1410 = vpop.trf.xlu0
    %v1411 = vpop.trf.xlu0
    %v1412 = vpop.trf.xlu0
    %v1413 = vpop.trf.xlu0
    %v1414 = vpop.trf.xlu0
    %v1415 = vpop.trf.xlu0
    %v1416 = vpop.trf.xlu0
    %v1417 = vpop.trf.xlu0
    %v1418 = vpop.trf.xlu0
    %v1419 = vld [vmem:[#allocation4] sm:$0x1]
    %1421 = vset.pattern.permute.xlu0 0
    %1422 = vperm.xlu0 %1421, %v1403
    %v1423 = vpop.permute.xlu0 %1422
    %v1425 = vmul.f32 %v1423, %v1419
    %v1426 = vadd.f32 %v1425, %v1385
    %1427 = vst [vmem:[#allocation4] sm:$0x1] %v1426
    %1428 = vst.msk [vmem:[#allocation2] sm:$0x1] %vm1281, %v1106
    // Predicated region
    $region30: #{tpu_custom_call.1} parent=1 // pred_check
      %p1429 = pneg %p51
    $region31: #{tpu_custom_call.1} parent=1 // pred_check_branch
      %1431 = sbr.rel (%p1429) target = $region33
    $region32: #{tpu_custom_call.1} parent=1 // pred_region
      %v1432 = vld [vmem:[#allocation4] sm:$0x1]
      %1433 = vst [vmem:[#allocation10] sm:$0x1] %v1432
      %v1434 = vld [vmem:[#allocation2] sm:$0x1]
      %1435 = vst.msk [vmem:[#allocation11] sm:$0x1] %vm1281, %v1434
      %v1436 = vld [vmem:[#allocation3] sm:$0x1]
      %1437 = vst.msk [vmem:[#allocation13] sm:$0x1] %vm1281, %v1436
    $region33: #{tpu_custom_call.1} parent=1 // pred_fallthru
      _
    // Predicated region
    $region34: #{tpu_custom_call.1} parent=1 // pred_check
      _
    $region35: #{tpu_custom_call.1} parent=1 // pred_check_branch
      %1439 = sbr.rel (0) target = $region37
    $region36: #{tpu_custom_call.1} parent=1 // pred_region
      %1441 = vsyncadd [#allocation9], 0
      %s1443 = sshll.u32 [#allocation10], 4
      %s1444 = int_to_ptr.vmem [resolvable:$true] %s1443
      %s1445 = sshll.u32 %s5, 4
      %s1446 = int_to_ptr.hbm [resolvable:$true] %s1445
      %1448 = dma.vmem_to_hbm [thread:$0]  %s1444, 16, %s1446, [#allocation9]
    $region37: #{tpu_custom_call.1} parent=1 // pred_fallthru
      _
    // Predicated region
    $region38: #{tpu_custom_call.1} parent=1 // pred_check
      _
    $region39: #{tpu_custom_call.1} parent=1 // pred_check_branch
      %1450 = sbr.rel (0) target = $region41
    $region40: #{tpu_custom_call.1} parent=1 // pred_region
      %1452 = vsyncadd [#allocation12], 0
      %s1454 = sshll.u32 [#allocation11], 4
      %s1455 = int_to_ptr.vmem [resolvable:$true] %s1454
      %s1456 = sshll.u32 %s6, 4
      %s1457 = int_to_ptr.hbm [resolvable:$true] %s1456
      %1459 = dma.vmem_to_hbm [thread:$0]  %s1455, 16, %s1457, [#allocation12]
    $region41: #{tpu_custom_call.1} parent=1 // pred_fallthru
      _
    // Predicated region
    $region42: #{tpu_custom_call.1} parent=1 // pred_check
      _
    $region43: #{tpu_custom_call.1} parent=1 // pred_check_branch
      %1461 = sbr.rel (0) target = $region45
    $region44: #{tpu_custom_call.1} parent=1 // pred_region
      %1463 = vsyncadd [#allocation12], 0
      %s1465 = sshll.u32 [#allocation13], 4
      %s1466 = int_to_ptr.vmem [resolvable:$true] %s1465
      %s1467 = sshll.u32 %s7, 4
      %s1468 = int_to_ptr.hbm [resolvable:$true] %s1467
      %1470 = dma.vmem_to_hbm [thread:$0]  %s1466, 16, %s1468, [#allocation12]
    $region45: #{tpu_custom_call.1} parent=1 // pred_fallthru
      _
    // Predicated region
    $region46: #{tpu_custom_call.1} parent=1 // pred_check
      _
    $region47: #{tpu_custom_call.1} parent=1 // pred_check_branch
      %1472 = sbr.rel (0) target = $region49
    $region48: #{tpu_custom_call.1} parent=1 // pred_region
      %1474 = dma.done [#allocation9], 16
    $region49: #{tpu_custom_call.1} parent=1 // pred_fallthru
      _
    // Predicated region
    $region50: #{tpu_custom_call.1} parent=1 // pred_check
      _
    $region51: #{tpu_custom_call.1} parent=1 // pred_check_branch
      %1476 = sbr.rel (0) target = $region53
    $region52: #{tpu_custom_call.1} parent=1 // pred_region
      %1478 = dma.done [#allocation12], 16
    $region53: #{tpu_custom_call.1} parent=1 // pred_fallthru
      _
    // Predicated region
    $region54: #{tpu_custom_call.1} parent=1 // pred_check
      _
    $region55: #{tpu_custom_call.1} parent=1 // pred_check_branch
      %1480 = sbr.rel (0) target = $region57
    $region56: #{tpu_custom_call.1} parent=1 // pred_region
      %1482 = dma.done [#allocation12], 16
    $region57: #{tpu_custom_call.1} parent=1 // pred_fallthru
      _
    %1483 = vsyncpa [#allocation8], 1
    %1484 = vsyncpa [#allocation9], 1
    %1485 = vsyncpa [#allocation12], 1

</llo_original>
